<compile_context>
chip_gen: v7x
topology: tpu7x:2x2x1
jax: 0.10.0
libtpu: 0.0.40
codegen_flags: <defaults>
</compile_context>

<pallas_src>
import math

import jax
import jax.numpy as jnp
from jax.experimental import pallas as pl
from jax.experimental.pallas import tpu as pltpu

# ---- small model dims consistent with the module's forward ----
B = 2             # batch
S = 8             # sequence length
D = 32            # args.embed_dim
NH = 4            # attention heads
HD = D // NH      # head dim
F = 64            # encoder FFN width
H = 64            # args.hidden_dim
T = 16            # target_size
T_PAD = 128       # lane-dense padded logits width
V = 50            # vocab size
DROP_RATE = 0.1   # args.drop_rate
LN_EPS = 1e-12


def _layer_norm(x, g, b):
    mu = jnp.mean(x, axis=-1, keepdims=True)
    var = jnp.mean((x - mu) ** 2, axis=-1, keepdims=True)
    return (x - mu) * jax.lax.rsqrt(var + LN_EPS) * g + b


# ---------------------------------------------------------------------------
# One fused kernel: embedding LN -> encoder layer -> CLS -> dropout -> MLP.
# Activations stay in VMEM for the whole forward pass; all weights are stored
# [in, out] so every matmul is a plain `x @ W + b`.
# ---------------------------------------------------------------------------
def intent_fwd_kernel(emb_ref, embg_ref, embb_ref,
                      wqkv_ref, bqkv_ref, wo_ref, bo_ref,
                      ln1g_ref, ln1b_ref,
                      w1_ref, b1_ref, w2_ref, b2_ref,
                      ln2g_ref, ln2b_ref,
                      mask_ref, wt_ref, bt_ref, wb_ref, bb_ref,
                      o_ref):
    # ---- embedding LayerNorm on the flattened (B*S, D) slab ----
    h = _layer_norm(emb_ref[...], embg_ref[...], embb_ref[...])      # (B*S, D)

    # ---- fused QKV projection: one (B*S, D) @ (D, 3D) matmul ----
    qkv = (jnp.dot(h, wqkv_ref[...], preferred_element_type=jnp.float32)
           + bqkv_ref[...])                                          # (B*S, 3D)

    # ---- multi-head self-attention, unrolled over (batch, head) with
    #      static row/lane slices (no transposes / relayouts) ----
    scale = 1.0 / math.sqrt(HD)
    ctx_rows = []
    for b in range(B):
        r0, r1 = b * S, (b + 1) * S
        head_ctx = []
        for hh in range(NH):
            q = qkv[r0:r1, hh * HD:(hh + 1) * HD]                    # (S, HD)
            k = qkv[r0:r1, D + hh * HD:D + (hh + 1) * HD]            # (S, HD)
            v = qkv[r0:r1, 2 * D + hh * HD:2 * D + (hh + 1) * HD]    # (S, HD)
            # q @ k^T via contraction on HD (no explicit transpose)
            s = jax.lax.dot_general(
                q, k, (((1,), (1,)), ((), ())),
                preferred_element_type=jnp.float32) * scale          # (S, S)
            p = jax.nn.softmax(s, axis=-1)
            head_ctx.append(
                jnp.dot(p, v, preferred_element_type=jnp.float32))   # (S, HD)
        ctx_rows.append(jnp.concatenate(head_ctx, axis=1))           # (S, D)
    ctx = jnp.concatenate(ctx_rows, axis=0)                          # (B*S, D)

    attn_out = (jnp.dot(ctx, wo_ref[...], preferred_element_type=jnp.float32)
                + bo_ref[...])
    x1 = _layer_norm(h + attn_out, ln1g_ref[...], ln1b_ref[...])

    # ---- FFN: Linear -> GELU -> Linear, residual + LN ----
    ffn_mid = jax.nn.gelu(
        jnp.dot(x1, w1_ref[...], preferred_element_type=jnp.float32) + b1_ref[...],
        approximate=True)
    ffn_out = (jnp.dot(ffn_mid, w2_ref[...], preferred_element_type=jnp.float32)
               + b2_ref[...])
    hidden = _layer_norm(x1 + ffn_out, ln2g_ref[...], ln2b_ref[...])  # last_hidden

    # ---- take <CLS> token (row 0 of each sequence) while still in VMEM ----
    cls = jnp.concatenate(
        [hidden[b * S:b * S + 1, :] for b in range(B)], axis=0)       # (B, D)

    # ---- dropout: precomputed scaled keep-mask (deterministic seed) ----
    x = cls * mask_ref[...]

    # ---- Classifier: Linear(D->H) -> ReLU -> Linear(H->T_PAD, zero-padded) ----
    mid = jnp.maximum(
        jnp.dot(x, wt_ref[...], preferred_element_type=jnp.float32) + bt_ref[...],
        0.0)
    o_ref[...] = (jnp.dot(mid, wb_ref[...], preferred_element_type=jnp.float32)
                  + bb_ref[...])                                      # (B, 128)


def intent_model_forward(emb_flat, enc_params, drop_mask, cls_params):
    inputs = (emb_flat, *enc_params, drop_mask, *cls_params)
    logits_pad = pl.pallas_call(
        intent_fwd_kernel,
        out_shape=jax.ShapeDtypeStruct((B, T_PAD), jnp.float32),
        in_specs=[pl.BlockSpec(memory_space=pltpu.MemorySpace.VMEM)] * len(inputs),
        out_specs=pl.BlockSpec(memory_space=pltpu.MemorySpace.VMEM),
    )(*inputs)
    return logits_pad[:, :T]                       # slice lane padding outside


if __name__ == "__main__":
    key = jax.random.PRNGKey(0)
    keys = iter(jax.random.split(key, 32))

    def nrm(shape):
        return jax.random.normal(next(keys), shape, jnp.float32) * 0.02

    zeros = lambda shape: jnp.zeros(shape, jnp.float32)
    ones = lambda shape: jnp.ones(shape, jnp.float32)

    # ---- embedding tables (lookup done as JAX glue; LN is inside kernel) ----
    tok_emb = nrm((V, D))
    pos_emb = nrm((S, D))
    emb_g, emb_b = ones((1, D)), zeros((1, D))

    # ---- encoder layer params (weights stored [in, out], QKV packed) ----
    enc_params = (
        emb_g, emb_b,                     # embedding LayerNorm
        nrm((D, 3 * D)), zeros((1, 3 * D)),  # Wqkv (q|k|v packed), bqkv
        nrm((D, D)), zeros((1, D)),          # Wo, bo
        ones((1, D)), zeros((1, D)),         # ln1 gamma, beta
        nrm((D, F)), zeros((1, F)),          # FFN W1, b1
        nrm((F, D)), zeros((1, D)),          # FFN W2, b2
        ones((1, D)), zeros((1, D)),         # ln2 gamma, beta
    )

    # ---- Classifier params (top: D->H, bottom: H->T padded to 128 lanes) ----
    wt, bt = nrm((D, H)), zeros((1, H))
    wb, bb = nrm((H, T)), zeros((1, T))
    wb_pad = jnp.pad(wb, ((0, 0), (0, T_PAD - T)))
    bb_pad = jnp.pad(bb, ((0, 0), (0, T_PAD - T)))
    cls_params = (wt, bt, wb_pad, bb_pad)

    # ---- synthetic tokenized inputs (inputs['input_ids']), position 0 = CLS ----
    ids = jax.random.randint(next(keys), (B, S), 2, V)
    ids = ids.at[:, 0].set(1)             # <CLS> token id

    # embedding lookup + position embedding (glue), flattened to (B*S, D)
    emb_flat = (jnp.take(tok_emb, ids, axis=0) + pos_emb[None, :, :]).reshape(B * S, D)

    # deterministic dropout keep-mask, scaled by 1/(1-p) (training-mode dropout)
    keep = jax.random.bernoulli(jax.random.PRNGKey(42), 1.0 - DROP_RATE, (B, D))
    drop_mask = keep.astype(jnp.float32) * (1.0 / (1.0 - DROP_RATE))

    logits = intent_model_forward(emb_flat, enc_params, drop_mask, cls_params)

    jax.block_until_ready(logits)
    assert logits.shape == (B, T) and logits.dtype == jnp.float32
    assert bool(jnp.all(jnp.isfinite(logits)))
    print("KERNEL_OK")
</pallas_src>

<mosaic_0001>
module attributes {stable_mosaic.version = 11 : i64} {
  func.func @intent_fwd_kernel(%arg0: memref<16x32xf32, #tpu.memory_space<vmem>>, %arg1: memref<1x32xf32, #tpu.memory_space<vmem>>, %arg2: memref<1x32xf32, #tpu.memory_space<vmem>>, %arg3: memref<32x96xf32, #tpu.memory_space<vmem>>, %arg4: memref<1x96xf32, #tpu.memory_space<vmem>>, %arg5: memref<32x32xf32, #tpu.memory_space<vmem>>, %arg6: memref<1x32xf32, #tpu.memory_space<vmem>>, %arg7: memref<1x32xf32, #tpu.memory_space<vmem>>, %arg8: memref<1x32xf32, #tpu.memory_space<vmem>>, %arg9: memref<32x64xf32, #tpu.memory_space<vmem>>, %arg10: memref<1x64xf32, #tpu.memory_space<vmem>>, %arg11: memref<64x32xf32, #tpu.memory_space<vmem>>, %arg12: memref<1x32xf32, #tpu.memory_space<vmem>>, %arg13: memref<1x32xf32, #tpu.memory_space<vmem>>, %arg14: memref<1x32xf32, #tpu.memory_space<vmem>>, %arg15: memref<2x32xf32, #tpu.memory_space<vmem>>, %arg16: memref<32x64xf32, #tpu.memory_space<vmem>>, %arg17: memref<1x64xf32, #tpu.memory_space<vmem>>, %arg18: memref<64x128xf32, #tpu.memory_space<vmem>>, %arg19: memref<1x128xf32, #tpu.memory_space<vmem>>, %arg20: memref<2x128xf32, #tpu.memory_space<vmem>>) attributes {dimension_semantics = [], scalar_prefetch = 0 : i64, scratch_operands = 0 : i64, tpu.core_type = #tpu.core_type<tc>} {
    %c0 = arith.constant 0 : index
    %c0_0 = arith.constant 0 : index
    %0 = vector.load %arg0[%c0, %c0_0] : memref<16x32xf32, #tpu.memory_space<vmem>>, vector<16x32xf32>
    %c0_1 = arith.constant 0 : index
    %c0_2 = arith.constant 0 : index
    %1 = vector.load %arg1[%c0_1, %c0_2] : memref<1x32xf32, #tpu.memory_space<vmem>>, vector<1x32xf32>
    %c0_3 = arith.constant 0 : index
    %c0_4 = arith.constant 0 : index
    %2 = vector.load %arg2[%c0_3, %c0_4] : memref<1x32xf32, #tpu.memory_space<vmem>>, vector<1x32xf32>
    %cst = arith.constant dense<0.000000e+00> : vector<16xf32>
    %3 = vector.multi_reduction <add>, %0, %cst [1] : vector<16x32xf32> to vector<16xf32>
    %4 = vector.shape_cast %3 : vector<16xf32> to vector<16x1xf32>
    %cst_5 = arith.constant 3.200000e+01 : f32
    %5 = vector.broadcast %cst_5 : f32 to vector<16x1xf32>
    %6 = arith.divf %4, %5 : vector<16x1xf32>
    %7 = vector.broadcast %6 : vector<16x1xf32> to vector<16x32xf32>
    %8 = arith.subf %0, %7 : vector<16x32xf32>
    %9 = arith.mulf %8, %8 : vector<16x32xf32>
    %cst_6 = arith.constant dense<0.000000e+00> : vector<16xf32>
    %10 = vector.multi_reduction <add>, %9, %cst_6 [1] : vector<16x32xf32> to vector<16xf32>
    %11 = vector.shape_cast %10 : vector<16xf32> to vector<16x1xf32>
    %cst_7 = arith.constant 3.200000e+01 : f32
    %12 = vector.broadcast %cst_7 : f32 to vector<16x1xf32>
    %13 = arith.divf %11, %12 : vector<16x1xf32>
    %14 = vector.broadcast %6 : vector<16x1xf32> to vector<16x32xf32>
    %15 = arith.subf %0, %14 : vector<16x32xf32>
    %cst_8 = arith.constant 9.99999996E-13 : f32
    %16 = vector.broadcast %cst_8 : f32 to vector<16x1xf32>
    %17 = arith.addf %13, %16 : vector<16x1xf32>
    %18 = math.rsqrt %17 : vector<16x1xf32>
    %19 = vector.broadcast %18 : vector<16x1xf32> to vector<16x32xf32>
    %20 = arith.mulf %15, %19 : vector<16x32xf32>
    %21 = vector.broadcast %1 : vector<1x32xf32> to vector<16x32xf32>
    %22 = arith.mulf %20, %21 : vector<16x32xf32>
    %23 = vector.broadcast %2 : vector<1x32xf32> to vector<16x32xf32>
    %24 = arith.addf %22, %23 : vector<16x32xf32>
    %c0_9 = arith.constant 0 : index
    %c0_10 = arith.constant 0 : index
    %25 = vector.load %arg3[%c0_9, %c0_10] : memref<32x96xf32, #tpu.memory_space<vmem>>, vector<32x96xf32>
    %cst_11 = arith.constant dense<0.000000e+00> : vector<16x96xf32>
    %26 = tpu.matmul %24, %25, %cst_11 {dimension_numbers = #tpu.dot_dimension_numbers<[1], [0], [0], [1], [0, 0, 1, 1], [], []>} : vector<16x32xf32>, vector<32x96xf32>, vector<16x96xf32> -> vector<16x96xf32>
    %c0_12 = arith.constant 0 : index
    %c0_13 = arith.constant 0 : index
    %27 = vector.load %arg4[%c0_12, %c0_13] : memref<1x96xf32, #tpu.memory_space<vmem>>, vector<1x96xf32>
    %28 = vector.broadcast %27 : vector<1x96xf32> to vector<16x96xf32>
    %29 = arith.addf %26, %28 : vector<16x96xf32>
    %30 = vector.extract_strided_slice %29 {offsets = [0, 0], sizes = [8, 8], strides = [1, 1]} : vector<16x96xf32> to vector<8x8xf32>
    %31 = vector.extract_strided_slice %29 {offsets = [0, 32], sizes = [8, 8], strides = [1, 1]} : vector<16x96xf32> to vector<8x8xf32>
    %32 = vector.extract_strided_slice %29 {offsets = [0, 64], sizes = [8, 8], strides = [1, 1]} : vector<16x96xf32> to vector<8x8xf32>
    %cst_14 = arith.constant dense<0.000000e+00> : vector<8x8xf32>
    %33 = tpu.matmul %30, %31, %cst_14 {dimension_numbers = #tpu.dot_dimension_numbers<[1], [1], [0], [0], [0, 0, 1, 0], [], []>} : vector<8x8xf32>, vector<8x8xf32>, vector<8x8xf32> -> vector<8x8xf32>
    %cst_15 = arith.constant 0.353553385 : f32
    %34 = vector.broadcast %cst_15 : f32 to vector<8x8xf32>
    %35 = arith.mulf %33, %34 : vector<8x8xf32>
    %cst_16 = arith.constant dense<0xFF800000> : vector<8xf32>
    %36 = vector.multi_reduction <maximumf>, %35, %cst_16 [1] : vector<8x8xf32> to vector<8xf32>
    %cst_17 = arith.constant 0xFF800000 : f32
    %37 = vector.broadcast %cst_17 : f32 to vector<8xf32>
    %38 = arith.maximumf %37, %36 : vector<8xf32>
    %39 = vector.shape_cast %38 : vector<8xf32> to vector<8x1xf32>
    %40 = vector.broadcast %39 : vector<8x1xf32> to vector<8x8xf32>
    %41 = arith.subf %35, %40 : vector<8x8xf32>
    %42 = math.exp %41 : vector<8x8xf32>
    %cst_18 = arith.constant dense<0.000000e+00> : vector<8xf32>
    %43 = vector.multi_reduction <add>, %42, %cst_18 [1] : vector<8x8xf32> to vector<8xf32>
    %44 = vector.shape_cast %43 : vector<8xf32> to vector<8x1xf32>
    %45 = vector.broadcast %44 : vector<8x1xf32> to vector<8x8xf32>
    %46 = arith.divf %42, %45 : vector<8x8xf32>
    %cst_19 = arith.constant dense<0.000000e+00> : vector<8x8xf32>
    %47 = tpu.matmul %46, %32, %cst_19 {dimension_numbers = #tpu.dot_dimension_numbers<[1], [0], [0], [1], [0, 0, 1, 1], [], []>} : vector<8x8xf32>, vector<8x8xf32>, vector<8x8xf32> -> vector<8x8xf32>
    %48 = vector.extract_strided_slice %29 {offsets = [0, 8], sizes = [8, 8], strides = [1, 1]} : vector<16x96xf32> to vector<8x8xf32>
    %49 = vector.extract_strided_slice %29 {offsets = [0, 40], sizes = [8, 8], strides = [1, 1]} : vector<16x96xf32> to vector<8x8xf32>
    %50 = vector.extract_strided_slice %29 {offsets = [0, 72], sizes = [8, 8], strides = [1, 1]} : vector<16x96xf32> to vector<8x8xf32>
    %cst_20 = arith.constant dense<0.000000e+00> : vector<8x8xf32>
    %51 = tpu.matmul %48, %49, %cst_20 {dimension_numbers = #tpu.dot_dimension_numbers<[1], [1], [0], [0], [0, 0, 1, 0], [], []>} : vector<8x8xf32>, vector<8x8xf32>, vector<8x8xf32> -> vector<8x8xf32>
    %cst_21 = arith.constant 0.353553385 : f32
    %52 = vector.broadcast %cst_21 : f32 to vector<8x8xf32>
    %53 = arith.mulf %51, %52 : vector<8x8xf32>
    %cst_22 = arith.constant dense<0xFF800000> : vector<8xf32>
    %54 = vector.multi_reduction <maximumf>, %53, %cst_22 [1] : vector<8x8xf32> to vector<8xf32>
    %cst_23 = arith.constant 0xFF800000 : f32
    %55 = vector.broadcast %cst_23 : f32 to vector<8xf32>
    %56 = arith.maximumf %55, %54 : vector<8xf32>
    %57 = vector.shape_cast %56 : vector<8xf32> to vector<8x1xf32>
    %58 = vector.broadcast %57 : vector<8x1xf32> to vector<8x8xf32>
    %59 = arith.subf %53, %58 : vector<8x8xf32>
    %60 = math.exp %59 : vector<8x8xf32>
    %cst_24 = arith.constant dense<0.000000e+00> : vector<8xf32>
    %61 = vector.multi_reduction <add>, %60, %cst_24 [1] : vector<8x8xf32> to vector<8xf32>
    %62 = vector.shape_cast %61 : vector<8xf32> to vector<8x1xf32>
    %63 = vector.broadcast %62 : vector<8x1xf32> to vector<8x8xf32>
    %64 = arith.divf %60, %63 : vector<8x8xf32>
    %cst_25 = arith.constant dense<0.000000e+00> : vector<8x8xf32>
    %65 = tpu.matmul %64, %50, %cst_25 {dimension_numbers = #tpu.dot_dimension_numbers<[1], [0], [0], [1], [0, 0, 1, 1], [], []>} : vector<8x8xf32>, vector<8x8xf32>, vector<8x8xf32> -> vector<8x8xf32>
    %66 = vector.extract_strided_slice %29 {offsets = [0, 16], sizes = [8, 8], strides = [1, 1]} : vector<16x96xf32> to vector<8x8xf32>
    %67 = vector.extract_strided_slice %29 {offsets = [0, 48], sizes = [8, 8], strides = [1, 1]} : vector<16x96xf32> to vector<8x8xf32>
    %68 = vector.extract_strided_slice %29 {offsets = [0, 80], sizes = [8, 8], strides = [1, 1]} : vector<16x96xf32> to vector<8x8xf32>
    %cst_26 = arith.constant dense<0.000000e+00> : vector<8x8xf32>
    %69 = tpu.matmul %66, %67, %cst_26 {dimension_numbers = #tpu.dot_dimension_numbers<[1], [1], [0], [0], [0, 0, 1, 0], [], []>} : vector<8x8xf32>, vector<8x8xf32>, vector<8x8xf32> -> vector<8x8xf32>
    %cst_27 = arith.constant 0.353553385 : f32
    %70 = vector.broadcast %cst_27 : f32 to vector<8x8xf32>
    %71 = arith.mulf %69, %70 : vector<8x8xf32>
    %cst_28 = arith.constant dense<0xFF800000> : vector<8xf32>
    %72 = vector.multi_reduction <maximumf>, %71, %cst_28 [1] : vector<8x8xf32> to vector<8xf32>
    %cst_29 = arith.constant 0xFF800000 : f32
    %73 = vector.broadcast %cst_29 : f32 to vector<8xf32>
    %74 = arith.maximumf %73, %72 : vector<8xf32>
    %75 = vector.shape_cast %74 : vector<8xf32> to vector<8x1xf32>
    %76 = vector.broadcast %75 : vector<8x1xf32> to vector<8x8xf32>
    %77 = arith.subf %71, %76 : vector<8x8xf32>
    %78 = math.exp %77 : vector<8x8xf32>
    %cst_30 = arith.constant dense<0.000000e+00> : vector<8xf32>
    %79 = vector.multi_reduction <add>, %78, %cst_30 [1] : vector<8x8xf32> to vector<8xf32>
    %80 = vector.shape_cast %79 : vector<8xf32> to vector<8x1xf32>
    %81 = vector.broadcast %80 : vector<8x1xf32> to vector<8x8xf32>
    %82 = arith.divf %78, %81 : vector<8x8xf32>
    %cst_31 = arith.constant dense<0.000000e+00> : vector<8x8xf32>
    %83 = tpu.matmul %82, %68, %cst_31 {dimension_numbers = #tpu.dot_dimension_numbers<[1], [0], [0], [1], [0, 0, 1, 1], [], []>} : vector<8x8xf32>, vector<8x8xf32>, vector<8x8xf32> -> vector<8x8xf32>
    %84 = vector.extract_strided_slice %29 {offsets = [0, 24], sizes = [8, 8], strides = [1, 1]} : vector<16x96xf32> to vector<8x8xf32>
    %85 = vector.extract_strided_slice %29 {offsets = [0, 56], sizes = [8, 8], strides = [1, 1]} : vector<16x96xf32> to vector<8x8xf32>
    %86 = vector.extract_strided_slice %29 {offsets = [0, 88], sizes = [8, 8], strides = [1, 1]} : vector<16x96xf32> to vector<8x8xf32>
    %cst_32 = arith.constant dense<0.000000e+00> : vector<8x8xf32>
    %87 = tpu.matmul %84, %85, %cst_32 {dimension_numbers = #tpu.dot_dimension_numbers<[1], [1], [0], [0], [0, 0, 1, 0], [], []>} : vector<8x8xf32>, vector<8x8xf32>, vector<8x8xf32> -> vector<8x8xf32>
    %cst_33 = arith.constant 0.353553385 : f32
    %88 = vector.broadcast %cst_33 : f32 to vector<8x8xf32>
    %89 = arith.mulf %87, %88 : vector<8x8xf32>
    %cst_34 = arith.constant dense<0xFF800000> : vector<8xf32>
    %90 = vector.multi_reduction <maximumf>, %89, %cst_34 [1] : vector<8x8xf32> to vector<8xf32>
    %cst_35 = arith.constant 0xFF800000 : f32
    %91 = vector.broadcast %cst_35 : f32 to vector<8xf32>
    %92 = arith.maximumf %91, %90 : vector<8xf32>
    %93 = vector.shape_cast %92 : vector<8xf32> to vector<8x1xf32>
    %94 = vector.broadcast %93 : vector<8x1xf32> to vector<8x8xf32>
    %95 = arith.subf %89, %94 : vector<8x8xf32>
    %96 = math.exp %95 : vector<8x8xf32>
    %cst_36 = arith.constant dense<0.000000e+00> : vector<8xf32>
    %97 = vector.multi_reduction <add>, %96, %cst_36 [1] : vector<8x8xf32> to vector<8xf32>
    %98 = vector.shape_cast %97 : vector<8xf32> to vector<8x1xf32>
    %99 = vector.broadcast %98 : vector<8x1xf32> to vector<8x8xf32>
    %100 = arith.divf %96, %99 : vector<8x8xf32>
    %cst_37 = arith.constant dense<0.000000e+00> : vector<8x8xf32>
    %101 = tpu.matmul %100, %86, %cst_37 {dimension_numbers = #tpu.dot_dimension_numbers<[1], [0], [0], [1], [0, 0, 1, 1], [], []>} : vector<8x8xf32>, vector<8x8xf32>, vector<8x8xf32> -> vector<8x8xf32>
    %102 = tpu.concatenate %47, %65, %83, %101 in 1 : vector<8x8xf32>, vector<8x8xf32>, vector<8x8xf32>, vector<8x8xf32> -> vector<8x32xf32>
    %103 = vector.extract_strided_slice %29 {offsets = [8, 0], sizes = [8, 8], strides = [1, 1]} : vector<16x96xf32> to vector<8x8xf32>
    %104 = vector.extract_strided_slice %29 {offsets = [8, 32], sizes = [8, 8], strides = [1, 1]} : vector<16x96xf32> to vector<8x8xf32>
    %105 = vector.extract_strided_slice %29 {offsets = [8, 64], sizes = [8, 8], strides = [1, 1]} : vector<16x96xf32> to vector<8x8xf32>
    %cst_38 = arith.constant dense<0.000000e+00> : vector<8x8xf32>
    %106 = tpu.matmul %103, %104, %cst_38 {dimension_numbers = #tpu.dot_dimension_numbers<[1], [1], [0], [0], [0, 0, 1, 0], [], []>} : vector<8x8xf32>, vector<8x8xf32>, vector<8x8xf32> -> vector<8x8xf32>
    %cst_39 = arith.constant 0.353553385 : f32
    %107 = vector.broadcast %cst_39 : f32 to vector<8x8xf32>
    %108 = arith.mulf %106, %107 : vector<8x8xf32>
    %cst_40 = arith.constant dense<0xFF800000> : vector<8xf32>
    %109 = vector.multi_reduction <maximumf>, %108, %cst_40 [1] : vector<8x8xf32> to vector<8xf32>
    %cst_41 = arith.constant 0xFF800000 : f32
    %110 = vector.broadcast %cst_41 : f32 to vector<8xf32>
    %111 = arith.maximumf %110, %109 : vector<8xf32>
    %112 = vector.shape_cast %111 : vector<8xf32> to vector<8x1xf32>
    %113 = vector.broadcast %112 : vector<8x1xf32> to vector<8x8xf32>
    %114 = arith.subf %108, %113 : vector<8x8xf32>
    %115 = math.exp %114 : vector<8x8xf32>
    %cst_42 = arith.constant dense<0.000000e+00> : vector<8xf32>
    %116 = vector.multi_reduction <add>, %115, %cst_42 [1] : vector<8x8xf32> to vector<8xf32>
    %117 = vector.shape_cast %116 : vector<8xf32> to vector<8x1xf32>
    %118 = vector.broadcast %117 : vector<8x1xf32> to vector<8x8xf32>
    %119 = arith.divf %115, %118 : vector<8x8xf32>
    %cst_43 = arith.constant dense<0.000000e+00> : vector<8x8xf32>
    %120 = tpu.matmul %119, %105, %cst_43 {dimension_numbers = #tpu.dot_dimension_numbers<[1], [0], [0], [1], [0, 0, 1, 1], [], []>} : vector<8x8xf32>, vector<8x8xf32>, vector<8x8xf32> -> vector<8x8xf32>
    %121 = vector.extract_strided_slice %29 {offsets = [8, 8], sizes = [8, 8], strides = [1, 1]} : vector<16x96xf32> to vector<8x8xf32>
    %122 = vector.extract_strided_slice %29 {offsets = [8, 40], sizes = [8, 8], strides = [1, 1]} : vector<16x96xf32> to vector<8x8xf32>
    %123 = vector.extract_strided_slice %29 {offsets = [8, 72], sizes = [8, 8], strides = [1, 1]} : vector<16x96xf32> to vector<8x8xf32>
    %cst_44 = arith.constant dense<0.000000e+00> : vector<8x8xf32>
    %124 = tpu.matmul %121, %122, %cst_44 {dimension_numbers = #tpu.dot_dimension_numbers<[1], [1], [0], [0], [0, 0, 1, 0], [], []>} : vector<8x8xf32>, vector<8x8xf32>, vector<8x8xf32> -> vector<8x8xf32>
    %cst_45 = arith.constant 0.353553385 : f32
    %125 = vector.broadcast %cst_45 : f32 to vector<8x8xf32>
    %126 = arith.mulf %124, %125 : vector<8x8xf32>
    %cst_46 = arith.constant dense<0xFF800000> : vector<8xf32>
    %127 = vector.multi_reduction <maximumf>, %126, %cst_46 [1] : vector<8x8xf32> to vector<8xf32>
    %cst_47 = arith.constant 0xFF800000 : f32
    %128 = vector.broadcast %cst_47 : f32 to vector<8xf32>
    %129 = arith.maximumf %128, %127 : vector<8xf32>
    %130 = vector.shape_cast %129 : vector<8xf32> to vector<8x1xf32>
    %131 = vector.broadcast %130 : vector<8x1xf32> to vector<8x8xf32>
    %132 = arith.subf %126, %131 : vector<8x8xf32>
    %133 = math.exp %132 : vector<8x8xf32>
    %cst_48 = arith.constant dense<0.000000e+00> : vector<8xf32>
    %134 = vector.multi_reduction <add>, %133, %cst_48 [1] : vector<8x8xf32> to vector<8xf32>
    %135 = vector.shape_cast %134 : vector<8xf32> to vector<8x1xf32>
    %136 = vector.broadcast %135 : vector<8x1xf32> to vector<8x8xf32>
    %137 = arith.divf %133, %136 : vector<8x8xf32>
    %cst_49 = arith.constant dense<0.000000e+00> : vector<8x8xf32>
    %138 = tpu.matmul %137, %123, %cst_49 {dimension_numbers = #tpu.dot_dimension_numbers<[1], [0], [0], [1], [0, 0, 1, 1], [], []>} : vector<8x8xf32>, vector<8x8xf32>, vector<8x8xf32> -> vector<8x8xf32>
    %139 = vector.extract_strided_slice %29 {offsets = [8, 16], sizes = [8, 8], strides = [1, 1]} : vector<16x96xf32> to vector<8x8xf32>
    %140 = vector.extract_strided_slice %29 {offsets = [8, 48], sizes = [8, 8], strides = [1, 1]} : vector<16x96xf32> to vector<8x8xf32>
    %141 = vector.extract_strided_slice %29 {offsets = [8, 80], sizes = [8, 8], strides = [1, 1]} : vector<16x96xf32> to vector<8x8xf32>
    %cst_50 = arith.constant dense<0.000000e+00> : vector<8x8xf32>
    %142 = tpu.matmul %139, %140, %cst_50 {dimension_numbers = #tpu.dot_dimension_numbers<[1], [1], [0], [0], [0, 0, 1, 0], [], []>} : vector<8x8xf32>, vector<8x8xf32>, vector<8x8xf32> -> vector<8x8xf32>
    %cst_51 = arith.constant 0.353553385 : f32
    %143 = vector.broadcast %cst_51 : f32 to vector<8x8xf32>
    %144 = arith.mulf %142, %143 : vector<8x8xf32>
    %cst_52 = arith.constant dense<0xFF800000> : vector<8xf32>
    %145 = vector.multi_reduction <maximumf>, %144, %cst_52 [1] : vector<8x8xf32> to vector<8xf32>
    %cst_53 = arith.constant 0xFF800000 : f32
    %146 = vector.broadcast %cst_53 : f32 to vector<8xf32>
    %147 = arith.maximumf %146, %145 : vector<8xf32>
    %148 = vector.shape_cast %147 : vector<8xf32> to vector<8x1xf32>
    %149 = vector.broadcast %148 : vector<8x1xf32> to vector<8x8xf32>
    %150 = arith.subf %144, %149 : vector<8x8xf32>
    %151 = math.exp %150 : vector<8x8xf32>
    %cst_54 = arith.constant dense<0.000000e+00> : vector<8xf32>
    %152 = vector.multi_reduction <add>, %151, %cst_54 [1] : vector<8x8xf32> to vector<8xf32>
    %153 = vector.shape_cast %152 : vector<8xf32> to vector<8x1xf32>
    %154 = vector.broadcast %153 : vector<8x1xf32> to vector<8x8xf32>
    %155 = arith.divf %151, %154 : vector<8x8xf32>
    %cst_55 = arith.constant dense<0.000000e+00> : vector<8x8xf32>
    %156 = tpu.matmul %155, %141, %cst_55 {dimension_numbers = #tpu.dot_dimension_numbers<[1], [0], [0], [1], [0, 0, 1, 1], [], []>} : vector<8x8xf32>, vector<8x8xf32>, vector<8x8xf32> -> vector<8x8xf32>
    %157 = vector.extract_strided_slice %29 {offsets = [8, 24], sizes = [8, 8], strides = [1, 1]} : vector<16x96xf32> to vector<8x8xf32>
    %158 = vector.extract_strided_slice %29 {offsets = [8, 56], sizes = [8, 8], strides = [1, 1]} : vector<16x96xf32> to vector<8x8xf32>
    %159 = vector.extract_strided_slice %29 {offsets = [8, 88], sizes = [8, 8], strides = [1, 1]} : vector<16x96xf32> to vector<8x8xf32>
    %cst_56 = arith.constant dense<0.000000e+00> : vector<8x8xf32>
    %160 = tpu.matmul %157, %158, %cst_56 {dimension_numbers = #tpu.dot_dimension_numbers<[1], [1], [0], [0], [0, 0, 1, 0], [], []>} : vector<8x8xf32>, vector<8x8xf32>, vector<8x8xf32> -> vector<8x8xf32>
    %cst_57 = arith.constant 0.353553385 : f32
    %161 = vector.broadcast %cst_57 : f32 to vector<8x8xf32>
    %162 = arith.mulf %160, %161 : vector<8x8xf32>
    %cst_58 = arith.constant dense<0xFF800000> : vector<8xf32>
    %163 = vector.multi_reduction <maximumf>, %162, %cst_58 [1] : vector<8x8xf32> to vector<8xf32>
    %cst_59 = arith.constant 0xFF800000 : f32
    %164 = vector.broadcast %cst_59 : f32 to vector<8xf32>
    %165 = arith.maximumf %164, %163 : vector<8xf32>
    %166 = vector.shape_cast %165 : vector<8xf32> to vector<8x1xf32>
    %167 = vector.broadcast %166 : vector<8x1xf32> to vector<8x8xf32>
    %168 = arith.subf %162, %167 : vector<8x8xf32>
    %169 = math.exp %168 : vector<8x8xf32>
    %cst_60 = arith.constant dense<0.000000e+00> : vector<8xf32>
    %170 = vector.multi_reduction <add>, %169, %cst_60 [1] : vector<8x8xf32> to vector<8xf32>
    %171 = vector.shape_cast %170 : vector<8xf32> to vector<8x1xf32>
    %172 = vector.broadcast %171 : vector<8x1xf32> to vector<8x8xf32>
    %173 = arith.divf %169, %172 : vector<8x8xf32>
    %cst_61 = arith.constant dense<0.000000e+00> : vector<8x8xf32>
    %174 = tpu.matmul %173, %159, %cst_61 {dimension_numbers = #tpu.dot_dimension_numbers<[1], [0], [0], [1], [0, 0, 1, 1], [], []>} : vector<8x8xf32>, vector<8x8xf32>, vector<8x8xf32> -> vector<8x8xf32>
    %175 = tpu.concatenate %120, %138, %156, %174 in 1 : vector<8x8xf32>, vector<8x8xf32>, vector<8x8xf32>, vector<8x8xf32> -> vector<8x32xf32>
    %176 = tpu.concatenate %102, %175 in 0 : vector<8x32xf32>, vector<8x32xf32> -> vector<16x32xf32>
    %c0_62 = arith.constant 0 : index
    %c0_63 = arith.constant 0 : index
    %177 = vector.load %arg5[%c0_62, %c0_63] : memref<32x32xf32, #tpu.memory_space<vmem>>, vector<32x32xf32>
    %cst_64 = arith.constant dense<0.000000e+00> : vector<16x32xf32>
    %178 = tpu.matmul %176, %177, %cst_64 {dimension_numbers = #tpu.dot_dimension_numbers<[1], [0], [0], [1], [0, 0, 1, 1], [], []>} : vector<16x32xf32>, vector<32x32xf32>, vector<16x32xf32> -> vector<16x32xf32>
    %c0_65 = arith.constant 0 : index
    %c0_66 = arith.constant 0 : index
    %179 = vector.load %arg6[%c0_65, %c0_66] : memref<1x32xf32, #tpu.memory_space<vmem>>, vector<1x32xf32>
    %180 = vector.broadcast %179 : vector<1x32xf32> to vector<16x32xf32>
    %181 = arith.addf %178, %180 : vector<16x32xf32>
    %182 = arith.addf %24, %181 : vector<16x32xf32>
    %c0_67 = arith.constant 0 : index
    %c0_68 = arith.constant 0 : index
    %183 = vector.load %arg7[%c0_67, %c0_68] : memref<1x32xf32, #tpu.memory_space<vmem>>, vector<1x32xf32>
    %c0_69 = arith.constant 0 : index
    %c0_70 = arith.constant 0 : index
    %184 = vector.load %arg8[%c0_69, %c0_70] : memref<1x32xf32, #tpu.memory_space<vmem>>, vector<1x32xf32>
    %cst_71 = arith.constant dense<0.000000e+00> : vector<16xf32>
    %185 = vector.multi_reduction <add>, %182, %cst_71 [1] : vector<16x32xf32> to vector<16xf32>
    %186 = vector.shape_cast %185 : vector<16xf32> to vector<16x1xf32>
    %cst_72 = arith.constant 3.200000e+01 : f32
    %187 = vector.broadcast %cst_72 : f32 to vector<16x1xf32>
    %188 = arith.divf %186, %187 : vector<16x1xf32>
    %189 = vector.broadcast %188 : vector<16x1xf32> to vector<16x32xf32>
    %190 = arith.subf %182, %189 : vector<16x32xf32>
    %191 = arith.mulf %190, %190 : vector<16x32xf32>
    %cst_73 = arith.constant dense<0.000000e+00> : vector<16xf32>
    %192 = vector.multi_reduction <add>, %191, %cst_73 [1] : vector<16x32xf32> to vector<16xf32>
    %193 = vector.shape_cast %192 : vector<16xf32> to vector<16x1xf32>
    %cst_74 = arith.constant 3.200000e+01 : f32
    %194 = vector.broadcast %cst_74 : f32 to vector<16x1xf32>
    %195 = arith.divf %193, %194 : vector<16x1xf32>
    %196 = vector.broadcast %188 : vector<16x1xf32> to vector<16x32xf32>
    %197 = arith.subf %182, %196 : vector<16x32xf32>
    %cst_75 = arith.constant 9.99999996E-13 : f32
    %198 = vector.broadcast %cst_75 : f32 to vector<16x1xf32>
    %199 = arith.addf %195, %198 : vector<16x1xf32>
    %200 = math.rsqrt %199 : vector<16x1xf32>
    %201 = vector.broadcast %200 : vector<16x1xf32> to vector<16x32xf32>
    %202 = arith.mulf %197, %201 : vector<16x32xf32>
    %203 = vector.broadcast %183 : vector<1x32xf32> to vector<16x32xf32>
    %204 = arith.mulf %202, %203 : vector<16x32xf32>
    %205 = vector.broadcast %184 : vector<1x32xf32> to vector<16x32xf32>
    %206 = arith.addf %204, %205 : vector<16x32xf32>
    %c0_76 = arith.constant 0 : index
    %c0_77 = arith.constant 0 : index
    %207 = vector.load %arg9[%c0_76, %c0_77] : memref<32x64xf32, #tpu.memory_space<vmem>>, vector<32x64xf32>
    %cst_78 = arith.constant dense<0.000000e+00> : vector<16x64xf32>
    %208 = tpu.matmul %206, %207, %cst_78 {dimension_numbers = #tpu.dot_dimension_numbers<[1], [0], [0], [1], [0, 0, 1, 1], [], []>} : vector<16x32xf32>, vector<32x64xf32>, vector<16x64xf32> -> vector<16x64xf32>
    %c0_79 = arith.constant 0 : index
    %c0_80 = arith.constant 0 : index
    %209 = vector.load %arg10[%c0_79, %c0_80] : memref<1x64xf32, #tpu.memory_space<vmem>>, vector<1x64xf32>
    %210 = vector.broadcast %209 : vector<1x64xf32> to vector<16x64xf32>
    %211 = arith.addf %208, %210 : vector<16x64xf32>
    %212 = arith.mulf %211, %211 : vector<16x64xf32>
    %213 = arith.mulf %211, %212 : vector<16x64xf32>
    %cst_81 = arith.constant 4.471500e-02 : f32
    %214 = vector.broadcast %cst_81 : f32 to vector<16x64xf32>
    %215 = arith.mulf %214, %213 : vector<16x64xf32>
    %216 = arith.addf %211, %215 : vector<16x64xf32>
    %cst_82 = arith.constant 0.797884583 : f32
    %217 = vector.broadcast %cst_82 : f32 to vector<16x64xf32>
    %218 = arith.mulf %217, %216 : vector<16x64xf32>
    %219 = math.tanh %218 : vector<16x64xf32>
    %cst_83 = arith.constant 1.000000e+00 : f32
    %220 = vector.broadcast %cst_83 : f32 to vector<16x64xf32>
    %221 = arith.addf %220, %219 : vector<16x64xf32>
    %cst_84 = arith.constant 5.000000e-01 : f32
    %222 = vector.broadcast %cst_84 : f32 to vector<16x64xf32>
    %223 = arith.mulf %222, %221 : vector<16x64xf32>
    %224 = arith.mulf %211, %223 : vector<16x64xf32>
    %c0_85 = arith.constant 0 : index
    %c0_86 = arith.constant 0 : index
    %225 = vector.load %arg11[%c0_85, %c0_86] : memref<64x32xf32, #tpu.memory_space<vmem>>, vector<64x32xf32>
    %cst_87 = arith.constant dense<0.000000e+00> : vector<16x32xf32>
    %226 = tpu.matmul %224, %225, %cst_87 {dimension_numbers = #tpu.dot_dimension_numbers<[1], [0], [0], [1], [0, 0, 1, 1], [], []>} : vector<16x64xf32>, vector<64x32xf32>, vector<16x32xf32> -> vector<16x32xf32>
    %c0_88 = arith.constant 0 : index
    %c0_89 = arith.constant 0 : index
    %227 = vector.load %arg12[%c0_88, %c0_89] : memref<1x32xf32, #tpu.memory_space<vmem>>, vector<1x32xf32>
    %228 = vector.broadcast %227 : vector<1x32xf32> to vector<16x32xf32>
    %229 = arith.addf %226, %228 : vector<16x32xf32>
    %230 = arith.addf %206, %229 : vector<16x32xf32>
    %c0_90 = arith.constant 0 : index
    %c0_91 = arith.constant 0 : index
    %231 = vector.load %arg13[%c0_90, %c0_91] : memref<1x32xf32, #tpu.memory_space<vmem>>, vector<1x32xf32>
    %c0_92 = arith.constant 0 : index
    %c0_93 = arith.constant 0 : index
    %232 = vector.load %arg14[%c0_92, %c0_93] : memref<1x32xf32, #tpu.memory_space<vmem>>, vector<1x32xf32>
    %cst_94 = arith.constant dense<0.000000e+00> : vector<16xf32>
    %233 = vector.multi_reduction <add>, %230, %cst_94 [1] : vector<16x32xf32> to vector<16xf32>
    %234 = vector.shape_cast %233 : vector<16xf32> to vector<16x1xf32>
    %cst_95 = arith.constant 3.200000e+01 : f32
    %235 = vector.broadcast %cst_95 : f32 to vector<16x1xf32>
    %236 = arith.divf %234, %235 : vector<16x1xf32>
    %237 = vector.broadcast %236 : vector<16x1xf32> to vector<16x32xf32>
    %238 = arith.subf %230, %237 : vector<16x32xf32>
    %239 = arith.mulf %238, %238 : vector<16x32xf32>
    %cst_96 = arith.constant dense<0.000000e+00> : vector<16xf32>
    %240 = vector.multi_reduction <add>, %239, %cst_96 [1] : vector<16x32xf32> to vector<16xf32>
    %241 = vector.shape_cast %240 : vector<16xf32> to vector<16x1xf32>
    %cst_97 = arith.constant 3.200000e+01 : f32
    %242 = vector.broadcast %cst_97 : f32 to vector<16x1xf32>
    %243 = arith.divf %241, %242 : vector<16x1xf32>
    %244 = vector.broadcast %236 : vector<16x1xf32> to vector<16x32xf32>
    %245 = arith.subf %230, %244 : vector<16x32xf32>
    %cst_98 = arith.constant 9.99999996E-13 : f32
    %246 = vector.broadcast %cst_98 : f32 to vector<16x1xf32>
    %247 = arith.addf %243, %246 : vector<16x1xf32>
    %248 = math.rsqrt %247 : vector<16x1xf32>
    %249 = vector.broadcast %248 : vector<16x1xf32> to vector<16x32xf32>
    %250 = arith.mulf %245, %249 : vector<16x32xf32>
    %251 = vector.broadcast %231 : vector<1x32xf32> to vector<16x32xf32>
    %252 = arith.mulf %250, %251 : vector<16x32xf32>
    %253 = vector.broadcast %232 : vector<1x32xf32> to vector<16x32xf32>
    %254 = arith.addf %252, %253 : vector<16x32xf32>
    %255 = vector.extract_strided_slice %254 {offsets = [0, 0], sizes = [1, 32], strides = [1, 1]} : vector<16x32xf32> to vector<1x32xf32>
    %256 = vector.extract_strided_slice %254 {offsets = [8, 0], sizes = [1, 32], strides = [1, 1]} : vector<16x32xf32> to vector<1x32xf32>
    %257 = tpu.concatenate %255, %256 in 0 : vector<1x32xf32>, vector<1x32xf32> -> vector<2x32xf32>
    %c0_99 = arith.constant 0 : index
    %c0_100 = arith.constant 0 : index
    %258 = vector.load %arg15[%c0_99, %c0_100] : memref<2x32xf32, #tpu.memory_space<vmem>>, vector<2x32xf32>
    %259 = arith.mulf %257, %258 : vector<2x32xf32>
    %c0_101 = arith.constant 0 : index
    %c0_102 = arith.constant 0 : index
    %260 = vector.load %arg16[%c0_101, %c0_102] : memref<32x64xf32, #tpu.memory_space<vmem>>, vector<32x64xf32>
    %cst_103 = arith.constant dense<0.000000e+00> : vector<2x64xf32>
    %261 = tpu.matmul %259, %260, %cst_103 {dimension_numbers = #tpu.dot_dimension_numbers<[1], [0], [0], [1], [0, 0, 1, 1], [], []>} : vector<2x32xf32>, vector<32x64xf32>, vector<2x64xf32> -> vector<2x64xf32>
    %c0_104 = arith.constant 0 : index
    %c0_105 = arith.constant 0 : index
    %262 = vector.load %arg17[%c0_104, %c0_105] : memref<1x64xf32, #tpu.memory_space<vmem>>, vector<1x64xf32>
    %263 = vector.broadcast %262 : vector<1x64xf32> to vector<2x64xf32>
    %264 = arith.addf %261, %263 : vector<2x64xf32>
    %cst_106 = arith.constant 0.000000e+00 : f32
    %265 = vector.broadcast %cst_106 : f32 to vector<2x64xf32>
    %266 = arith.maximumf %264, %265 : vector<2x64xf32>
    %c0_107 = arith.constant 0 : index
    %c0_108 = arith.constant 0 : index
    %267 = vector.load %arg18[%c0_107, %c0_108] : memref<64x128xf32, #tpu.memory_space<vmem>>, vector<64x128xf32>
    %cst_109 = arith.constant dense<0.000000e+00> : vector<2x128xf32>
    %268 = tpu.matmul %266, %267, %cst_109 {dimension_numbers = #tpu.dot_dimension_numbers<[1], [0], [0], [1], [0, 0, 1, 1], [], []>} : vector<2x64xf32>, vector<64x128xf32>, vector<2x128xf32> -> vector<2x128xf32>
    %c0_110 = arith.constant 0 : index
    %c0_111 = arith.constant 0 : index
    %269 = vector.load %arg19[%c0_110, %c0_111] : memref<1x128xf32, #tpu.memory_space<vmem>>, vector<1x128xf32>
    %270 = vector.broadcast %269 : vector<1x128xf32> to vector<2x128xf32>
    %271 = arith.addf %268, %270 : vector<2x128xf32>
    %c0_112 = arith.constant 0 : index
    %c0_113 = arith.constant 0 : index
    %272 = vector.load %arg20[%c0_112, %c0_113] : memref<2x128xf32, #tpu.memory_space<vmem>>, vector<2x128xf32>
    tpu.vector_store %arg20[%c0_112, %c0_113], %271 {strides = array<i32>} : memref<2x128xf32, #tpu.memory_space<vmem>>, vector<2x128xf32>,
    return
  }
}

</mosaic_0001>

<llo_original>
// kernel: tpu_custom_call.1
$region0: #{tpu_custom_call.1}
  #allocation0 [shape = 'u32[]', space=smem, size = 0x4, offset = 0x4, fixed_abs, tag = 'smem constant byte address 0x4 - core index']
  #allocation1 [shape = 'u32[144,128]{1,0:T(1,128)}', space=vmem, size = 0x12000, scoped, tag = 'internal scratch']
  %s0 = inlined_call_operand.hbm [shape: f32[16,32], index: 0, kind: input, shape index: {}]
  %s1 = inlined_call_operand.vmem [shape: f32[1,32], index: 1, kind: input, shape index: {}]
  %s2 = inlined_call_operand.vmem [shape: f32[1,32], index: 2, kind: input, shape index: {}]
  %s3 = inlined_call_operand.vmem [shape: f32[32,96], index: 3, kind: input, shape index: {}]
  %s4 = inlined_call_operand.vmem [shape: f32[1,96], index: 4, kind: input, shape index: {}]
  %s5 = inlined_call_operand.hbm [shape: f32[32,32], index: 5, kind: input, shape index: {}]
  %s6 = inlined_call_operand.vmem [shape: f32[1,32], index: 6, kind: input, shape index: {}]
  %s7 = inlined_call_operand.vmem [shape: f32[1,32], index: 7, kind: input, shape index: {}]
  %s8 = inlined_call_operand.vmem [shape: f32[1,32], index: 8, kind: input, shape index: {}]
  %s9 = inlined_call_operand.hbm [shape: f32[32,64], index: 9, kind: input, shape index: {}]
  %s10 = inlined_call_operand.vmem [shape: f32[1,64], index: 10, kind: input, shape index: {}]
  %s11 = inlined_call_operand.vmem [shape: f32[64,32], index: 11, kind: input, shape index: {}]
  %s12 = inlined_call_operand.vmem [shape: f32[1,32], index: 12, kind: input, shape index: {}]
  %s13 = inlined_call_operand.vmem [shape: f32[1,32], index: 13, kind: input, shape index: {}]
  %s14 = inlined_call_operand.vmem [shape: f32[1,32], index: 14, kind: input, shape index: {}]
  %s15 = inlined_call_operand.vmem [shape: f32[2,32], index: 15, kind: input, shape index: {}]
  %s16 = inlined_call_operand.hbm [shape: f32[32,64], index: 16, kind: input, shape index: {}]
  %s17 = inlined_call_operand.vmem [shape: f32[1,64], index: 17, kind: input, shape index: {}]
  %s18 = inlined_call_operand.vmem [shape: f32[64,128], index: 18, kind: input, shape index: {}]
  %s19 = inlined_call_operand.vmem [shape: f32[1,128], index: 19, kind: input, shape index: {}]
  %s20 = inlined_call_operand.hbm [shape: f32[2,128], index: 20, kind: output, shape index: {}]
  %s21 = sld [smem:[#allocation0]]
  $region106: #{tpu_custom_call.1} parent=0
    _
  %s23 = ssub.s32 1, %s21
  %s24 = scalar_select 0, %s23, %s21
  $region1: #{tpu_custom_call.1} parent=0
    #allocation2 [shape = 'u8[8192]{0}', space=vmem, size = 0x2000, scoped, tag = 'input window, operand 0, single buffered']
    #allocation3 [shape = 's32[1]{0}', space=sflag, size = 0x4, scoped, tag = 'scoped memory for tpu_custom_call.1']
    #allocation4 [shape = 's32[1]{0}', space=sflag, size = 0x4, scoped, tag = 'scoped memory for tpu_custom_call.1']
    #allocation5 [shape = 'u8[16384]{0}', space=vmem, size = 0x4000, scoped, tag = 'input window, operand 5, single buffered']
    #allocation6 [shape = 's32[1]{0}', space=sflag, size = 0x4, scoped, tag = 'scoped memory for tpu_custom_call.1']
    #allocation7 [shape = 'u8[16384]{0}', space=vmem, size = 0x4000, scoped, tag = 'input window, operand 9, single buffered']
    #allocation8 [shape = 'u8[16384]{0}', space=vmem, size = 0x4000, scoped, tag = 'input window, operand 16, single buffered']
    #allocation9 [shape = 's32[1]{0}', space=sflag, size = 0x4, scoped, tag = 'scoped memory for tpu_custom_call.1']
    #allocation10 [shape = 'u8[1024]{0}', space=vmem, size = 0x400, scoped, tag = 'output window, operand 0, single buffered']
    %25 = vsyncpa [#allocation3], 0
    %26 = vsyncpa [#allocation6], 0
    %27 = vsyncpa [#allocation9], 0
    %28 = vsyncpa [#allocation4], 0
    // Predicated region
    $region2: #{tpu_custom_call.1} parent=1 // pred_check
      _
    $region3: #{tpu_custom_call.1} parent=1 // pred_check_branch
      %30 = sbr.rel (0) target = $region5
    $region4: #{tpu_custom_call.1} parent=1 // pred_region
      %s32 = ssub.s32 256, 256
      %33 = vsyncadd [#allocation3], %s32
      %s34 = sshll.u32 [#allocation2], 4
      %s35 = int_to_ptr.vmem [resolvable:$true] %s34
      %40 = dma.hbm_to_vmem [thread:$0]  %s0, 256, %s35, [#allocation3], 128, 128, 8
    $region5: #{tpu_custom_call.1} parent=1 // pred_fallthru
      _
    // Predicated region
    $region6: #{tpu_custom_call.1} parent=1 // pred_check
      _
    $region7: #{tpu_custom_call.1} parent=1 // pred_check_branch
      %42 = sbr.rel (0) target = $region9
    $region8: #{tpu_custom_call.1} parent=1 // pred_region
      _
    $region9: #{tpu_custom_call.1} parent=1 // pred_fallthru
      _
    // Predicated region
    $region10: #{tpu_custom_call.1} parent=1 // pred_check
      _
    $region11: #{tpu_custom_call.1} parent=1 // pred_check_branch
      %44 = sbr.rel (0) target = $region13
    $region12: #{tpu_custom_call.1} parent=1 // pred_region
      _
    $region13: #{tpu_custom_call.1} parent=1 // pred_fallthru
      _
    // Predicated region
    $region14: #{tpu_custom_call.1} parent=1 // pred_check
      _
    $region15: #{tpu_custom_call.1} parent=1 // pred_check_branch
      %46 = sbr.rel (0) target = $region17
    $region16: #{tpu_custom_call.1} parent=1 // pred_region
      _
    $region17: #{tpu_custom_call.1} parent=1 // pred_fallthru
      _
    // Predicated region
    $region18: #{tpu_custom_call.1} parent=1 // pred_check
      _
    $region19: #{tpu_custom_call.1} parent=1 // pred_check_branch
      %48 = sbr.rel (0) target = $region21
    $region20: #{tpu_custom_call.1} parent=1 // pred_region
      _
    $region21: #{tpu_custom_call.1} parent=1 // pred_fallthru
      _
    // Predicated region
    $region22: #{tpu_custom_call.1} parent=1 // pred_check
      _
    $region23: #{tpu_custom_call.1} parent=1 // pred_check_branch
      %50 = sbr.rel (0) target = $region25
    $region24: #{tpu_custom_call.1} parent=1 // pred_region
      %s52 = ssub.s32 512, 512
      %53 = vsyncadd [#allocation6], %s52
      %s54 = sshll.u32 [#allocation5], 4
      %s55 = int_to_ptr.vmem [resolvable:$true] %s54
      %60 = dma.hbm_to_vmem [thread:$0]  %s5, 512, %s55, [#allocation6], 128, 128, 8
    $region25: #{tpu_custom_call.1} parent=1 // pred_fallthru
      _
    // Predicated region
    $region26: #{tpu_custom_call.1} parent=1 // pred_check
      _
    $region27: #{tpu_custom_call.1} parent=1 // pred_check_branch
      %62 = sbr.rel (0) target = $region29
    $region28: #{tpu_custom_call.1} parent=1 // pred_region
      _
    $region29: #{tpu_custom_call.1} parent=1 // pred_fallthru
      _
    // Predicated region
    $region30: #{tpu_custom_call.1} parent=1 // pred_check
      _
    $region31: #{tpu_custom_call.1} parent=1 // pred_check_branch
      %64 = sbr.rel (0) target = $region33
    $region32: #{tpu_custom_call.1} parent=1 // pred_region
      _
    $region33: #{tpu_custom_call.1} parent=1 // pred_fallthru
      _
    // Predicated region
    $region34: #{tpu_custom_call.1} parent=1 // pred_check
      _
    $region35: #{tpu_custom_call.1} parent=1 // pred_check_branch
      %66 = sbr.rel (0) target = $region37
    $region36: #{tpu_custom_call.1} parent=1 // pred_region
      _
    $region37: #{tpu_custom_call.1} parent=1 // pred_fallthru
      _
    // Predicated region
    $region38: #{tpu_custom_call.1} parent=1 // pred_check
      _
    $region39: #{tpu_custom_call.1} parent=1 // pred_check_branch
      %68 = sbr.rel (0) target = $region41
    $region40: #{tpu_custom_call.1} parent=1 // pred_region
      %s70 = ssub.s32 512, 512
      %71 = vsyncadd [#allocation6], %s70
      %s72 = sshll.u32 [#allocation7], 4
      %s73 = int_to_ptr.vmem [resolvable:$true] %s72
      %78 = dma.hbm_to_vmem [thread:$0]  %s9, 512, %s73, [#allocation6], 128, 128, 8
    $region41: #{tpu_custom_call.1} parent=1 // pred_fallthru
      _
    // Predicated region
    $region42: #{tpu_custom_call.1} parent=1 // pred_check
      _
    $region43: #{tpu_custom_call.1} parent=1 // pred_check_branch
      %80 = sbr.rel (0) target = $region45
    $region44: #{tpu_custom_call.1} parent=1 // pred_region
      _
    $region45: #{tpu_custom_call.1} parent=1 // pred_fallthru
      _
    // Predicated region
    $region46: #{tpu_custom_call.1} parent=1 // pred_check
      _
    $region47: #{tpu_custom_call.1} parent=1 // pred_check_branch
      %82 = sbr.rel (0) target = $region49
    $region48: #{tpu_custom_call.1} parent=1 // pred_region
      _
    $region49: #{tpu_custom_call.1} parent=1 // pred_fallthru
      _
    // Predicated region
    $region50: #{tpu_custom_call.1} parent=1 // pred_check
      _
    $region51: #{tpu_custom_call.1} parent=1 // pred_check_branch
      %84 = sbr.rel (0) target = $region53
    $region52: #{tpu_custom_call.1} parent=1 // pred_region
      _
    $region53: #{tpu_custom_call.1} parent=1 // pred_fallthru
      _
    // Predicated region
    $region54: #{tpu_custom_call.1} parent=1 // pred_check
      _
    $region55: #{tpu_custom_call.1} parent=1 // pred_check_branch
      %86 = sbr.rel (0) target = $region57
    $region56: #{tpu_custom_call.1} parent=1 // pred_region
      _
    $region57: #{tpu_custom_call.1} parent=1 // pred_fallthru
      _
    // Predicated region
    $region58: #{tpu_custom_call.1} parent=1 // pred_check
      _
    $region59: #{tpu_custom_call.1} parent=1 // pred_check_branch
      %88 = sbr.rel (0) target = $region61
    $region60: #{tpu_custom_call.1} parent=1 // pred_region
      _
    $region61: #{tpu_custom_call.1} parent=1 // pred_fallthru
      _
    // Predicated region
    $region62: #{tpu_custom_call.1} parent=1 // pred_check
      _
    $region63: #{tpu_custom_call.1} parent=1 // pred_check_branch
      %90 = sbr.rel (0) target = $region65
    $region64: #{tpu_custom_call.1} parent=1 // pred_region
      _
    $region65: #{tpu_custom_call.1} parent=1 // pred_fallthru
      _
    // Predicated region
    $region66: #{tpu_custom_call.1} parent=1 // pred_check
      _
    $region67: #{tpu_custom_call.1} parent=1 // pred_check_branch
      %92 = sbr.rel (0) target = $region69
    $region68: #{tpu_custom_call.1} parent=1 // pred_region
      %s94 = ssub.s32 512, 512
      %95 = vsyncadd [#allocation9], %s94
      %s96 = sshll.u32 [#allocation8], 4
      %s97 = int_to_ptr.vmem [resolvable:$true] %s96
      %102 = dma.hbm_to_vmem [thread:$0]  %s16, 512, %s97, [#allocation9], 128, 128, 8
    $region69: #{tpu_custom_call.1} parent=1 // pred_fallthru
      _
    // Predicated region
    $region70: #{tpu_custom_call.1} parent=1 // pred_check
      _
    $region71: #{tpu_custom_call.1} parent=1 // pred_check_branch
      %104 = sbr.rel (0) target = $region73
    $region72: #{tpu_custom_call.1} parent=1 // pred_region
      _
    $region73: #{tpu_custom_call.1} parent=1 // pred_fallthru
      _
    // Predicated region
    $region74: #{tpu_custom_call.1} parent=1 // pred_check
      _
    $region75: #{tpu_custom_call.1} parent=1 // pred_check_branch
      %106 = sbr.rel (0) target = $region77
    $region76: #{tpu_custom_call.1} parent=1 // pred_region
      _
    $region77: #{tpu_custom_call.1} parent=1 // pred_fallthru
      _
    // Predicated region
    $region78: #{tpu_custom_call.1} parent=1 // pred_check
      _
    $region79: #{tpu_custom_call.1} parent=1 // pred_check_branch
      %108 = sbr.rel (0) target = $region81
    $region80: #{tpu_custom_call.1} parent=1 // pred_region
      _
    $region81: #{tpu_custom_call.1} parent=1 // pred_fallthru
      _
    // Predicated region
    $region82: #{tpu_custom_call.1} parent=1 // pred_check
      _
    $region83: #{tpu_custom_call.1} parent=1 // pred_check_branch
      %110 = sbr.rel (0) target = $region85
    $region84: #{tpu_custom_call.1} parent=1 // pred_region
      %111 = dma.done [#allocation3], 256
    $region85: #{tpu_custom_call.1} parent=1 // pred_fallthru
      _
    // Predicated region
    $region86: #{tpu_custom_call.1} parent=1 // pred_check
      _
    $region87: #{tpu_custom_call.1} parent=1 // pred_check_branch
      %113 = sbr.rel (0) target = $region89
    $region88: #{tpu_custom_call.1} parent=1 // pred_region
      %114 = dma.done [#allocation6], 512
    $region89: #{tpu_custom_call.1} parent=1 // pred_fallthru
      _
    // Predicated region
    $region90: #{tpu_custom_call.1} parent=1 // pred_check
      _
    $region91: #{tpu_custom_call.1} parent=1 // pred_check_branch
      %116 = sbr.rel (0) target = $region93
    $region92: #{tpu_custom_call.1} parent=1 // pred_region
      %117 = dma.done [#allocation6], 512
    $region93: #{tpu_custom_call.1} parent=1 // pred_fallthru
      _
    // Predicated region
    $region94: #{tpu_custom_call.1} parent=1 // pred_check
      _
    $region95: #{tpu_custom_call.1} parent=1 // pred_check_branch
      %119 = sbr.rel (0) target = $region97
    $region96: #{tpu_custom_call.1} parent=1 // pred_region
      %120 = dma.done [#allocation9], 512
    $region97: #{tpu_custom_call.1} parent=1 // pred_fallthru
      _
    %v121 = vld [vmem:[#allocation2] sm:$0xff]
    %v122 = vld [vmem:[#allocation2 + $0x8] sm:$0xff]
    %v123 = vld [vmem:[%s1] sm:$0x1]
    %v124 = vld [vmem:[%s2] sm:$0x1]
    %vm125 = vcmask 261120
    %v126 = vsel %vm125, %v121, 0.0
    %127 = vadd.xlane.f32.xlu0 %v126
    %v128 = vpop.xlane.xlu0 %127
    %v129 = vsel %vm125, %v122, 0.0
    %130 = vadd.xlane.f32.xlu0 %v129
    %v131 = vpop.xlane.xlu0 %130
    %v132 = vrcp.pop 32.0
    %v133 = vmul.f32 %v128, %v132
    %v134 = vmul.f32 %v131, %v132
    %v135 = vsub.f32 %v121, %v133
    %v136 = vsub.f32 %v122, %v134
    %v137 = vmul.f32 %v135, %v135
    %v138 = vmul.f32 %v136, %v136
    %v139 = vsel %vm125, %v137, 0.0
    %140 = vadd.xlane.f32.xlu0 %v139
    %v141 = vpop.xlane.xlu0 %140
    %v142 = vsel %vm125, %v138, 0.0
    %143 = vadd.xlane.f32.xlu0 %v142
    %v144 = vpop.xlane.xlu0 %143
    %v145 = vmul.f32 %v141, %v132
    %v146 = vmul.f32 %v144, %v132
    %v147 = vadd.f32 %v145, 1e-12
    %v148 = vadd.f32 %v146, 1e-12
    %v149 = vrsqrt.pop %v147
    %v150 = vrsqrt.pop %v148
    %v151 = vmul.f32 %v135, %v149
    %v152 = vmul.f32 %v136, %v150
    %v154 = vlaneseq
    %v155 = vshrl.u32 %v154, 7
    %v156 = vsub.s32 0, %v155
    %v157 = vrot.slane %v123, %v156
    %v159 = vmul.f32 %v151, %v157
    %v160 = vmul.f32 %v152, %v157
    %v162 = vlaneseq
    %v163 = vshrl.u32 %v162, 7
    %v164 = vsub.s32 0, %v163
    %v165 = vrot.slane %v124, %v164
    %v167 = vadd.f32 %v159, %v165
    %v168 = vadd.f32 %v160, %v165
    %v169 = vld [vmem:[%s3] sm:$0xff]
    %v170 = vld [vmem:[%s3 + $0x8] sm:$0xff]
    %v171 = vld [vmem:[%s3 + $0x10] sm:$0xff]
    %v172 = vld [vmem:[%s3 + $0x18] sm:$0xff]
    %v173 = vld [vmem:[%s4] sm:$0x1]
    %v175 = vlaneseq
    %v176 = vshrl.u32 %v175, 7
    %v177 = vsub.s32 0, %v176
    %v178 = vrot.slane %v173, %v177
    %v181 = vsel %vm125, %v167, 0
    %v184 = vsel %vm125, %v168, 0
    %186 = vmatprep.subr.mxu0 0.0
    %187 = vmatpush1.msra.mxu0 %v169
    %188 = vmatprep.subr.mxu0 0.0
    %189 = vmatpush1.msra.mxu0 %v170
    %190 = vmatprep.subr.mxu0 0.0
    %191 = vmatpush1.msra.mxu0 %v171
    %192 = vmatprep.subr.mxu0 0.0
    %193 = vmatpush1.msra.mxu0 %v172
    %194 = vmatprep.subr.mxu0 0.0
    %195 = vmatpush1.msra.mxu0 0.0
    %196 = vmatprep.subr.mxu0 0.0
    %197 = vmatpush1.msra.mxu0 0.0
    %198 = vmatprep.subr.mxu0 0.0
    %199 = vmatpush1.msra.mxu0 0.0
    %200 = vmatprep.subr.mxu0 0.0
    %201 = vmatpush1.msra.mxu0 0.0
    %202 = vmatprep.subr.mxu0 0.0
    %203 = vmatpush1.msra.mxu0 0.0
    %204 = vmatprep.subr.mxu0 0.0
    %205 = vmatpush1.msra.mxu0 0.0
    %206 = vmatprep.subr.mxu0 0.0
    %207 = vmatpush1.msra.mxu0 0.0
    %208 = vmatprep.subr.mxu0 0.0
    %209 = vmatpush1.msra.mxu0 0.0
    %210 = vmatprep.subr.mxu0 0.0
    %211 = vmatpush1.msra.mxu0 0.0
    %212 = vmatprep.subr.mxu0 0.0
    %213 = vmatpush1.msra.mxu0 0.0
    %214 = vmatprep.subr.mxu0 0.0
    %215 = vmatpush1.msra.mxu0 0.0
    %216 = vmatprep.subr.mxu0 0.0
    %217 = vmatpush1.msra.mxu0 0.0
    %218 = vmatprep.subr.mxu0 0.0
    %219 = vmatpush1.msra.mxu0 0.0
    %220 = vmatprep.subr.mxu0 0.0
    %221 = vmatpush1.msra.mxu0 0.0
    %222 = vmatprep.subr.mxu0 0.0
    %223 = vmatpush1.msra.mxu0 0.0
    %224 = vmatprep.subr.mxu0 0.0
    %225 = vmatpush1.msra.mxu0 0.0
    %226 = vmatprep.subr.mxu0 0.0
    %227 = vmatpush1.msra.mxu0 0.0
    %228 = vmatprep.subr.mxu0 0.0
    %229 = vmatpush1.msra.mxu0 0.0
    %230 = vmatprep.subr.mxu0 0.0
    %231 = vmatpush1.msra.mxu0 0.0
    %232 = vmatprep.subr.mxu0 0.0
    %233 = vmatpush1.msra.mxu0 0.0
    %234 = vmatprep.subr.mxu0 0.0
    %235 = vmatpush1.msra.mxu0 0.0
    %236 = vmatprep.subr.mxu0 0.0
    %237 = vmatpush1.msra.mxu0 0.0
    %238 = vmatprep.subr.mxu0 0.0
    %239 = vmatpush1.msra.mxu0 0.0
    %240 = vmatprep.subr.mxu0 0.0
    %241 = vmatpush1.msra.mxu0 0.0
    %242 = vmatprep.subr.mxu0 0.0
    %243 = vmatpush1.msra.mxu0 0.0
    %244 = vmatprep.subr.mxu0 0.0
    %245 = vmatpush1.msra.mxu0 0.0
    %246 = vmatprep.subr.mxu0 0.0
    %247 = vmatpush1.msra.mxu0 0.0
    %248 = vmatprep.subr.mxu0 0.0
    %249 = vmatpush1.msra.mxu0 0.0
    %250 = vmatprep.mubr.f32.mxu0 0.0
    %251 = vmatmul.mubr.f32.gmra.mrb[0].mxu0 %v181
    %v252 = vpop.f32.mrb[0].mxu0
    %v253 = vadd.f32 %v178, %v252
    %v254 = vpop.f32.mrb[0].mxu0
    %255 = vmatprep.mubr.f32.mxu0 0.0
    %256 = vmatmul.mubr.f32.gmra.mrb[0].mxu0 %v184
    %v257 = vpop.f32.mrb[0].mxu0
    %v258 = vadd.f32 %v178, %v257
    %v259 = vpop.f32.mrb[0].mxu0
    %260 = vdwg.mxu0
    %262 = vrot.lane.b32.xlu0 %v253, 96
    %v263 = vpop.permute.xlu0 %262
    %vm264 = vcmask 64512
    %v265 = vsel %vm264, %v253, 0
    %v267 = vsel %vm264, %v263, 0
    %269 = vmatprep.subr.mxu0 0.0
    %270 = vmatpush1.xpose.msra.mxu0 %v267
    %271 = vmatprep.subr.mxu0 0.0
    %272 = vmatpush1.xpose.msra.mxu0 0.0
    %273 = vmatprep.subr.mxu0 0.0
    %274 = vmatpush1.xpose.msra.mxu0 0.0
    %275 = vmatprep.subr.mxu0 0.0
    %276 = vmatpush1.xpose.msra.mxu0 0.0
    %277 = vmatprep.subr.mxu0 0.0
    %278 = vmatpush1.xpose.msra.mxu0 0.0
    %279 = vmatprep.subr.mxu0 0.0
    %280 = vmatpush1.xpose.msra.mxu0 0.0
    %281 = vmatprep.subr.mxu0 0.0
    %282 = vmatpush1.xpose.msra.mxu0 0.0
    %283 = vmatprep.subr.mxu0 0.0
    %284 = vmatpush1.xpose.msra.mxu0 0.0
    %285 = vmatprep.subr.mxu0 0.0
    %286 = vmatpush1.xpose.msra.mxu0 0.0
    %287 = vmatprep.subr.mxu0 0.0
    %288 = vmatpush1.xpose.msra.mxu0 0.0
    %289 = vmatprep.subr.mxu0 0.0
    %290 = vmatpush1.xpose.msra.mxu0 0.0
    %291 = vmatprep.subr.mxu0 0.0
    %292 = vmatpush1.xpose.msra.mxu0 0.0
    %293 = vmatprep.subr.mxu0 0.0
    %294 = vmatpush1.xpose.msra.mxu0 0.0
    %295 = vmatprep.subr.mxu0 0.0
    %296 = vmatpush1.xpose.msra.mxu0 0.0
    %297 = vmatprep.subr.mxu0 0.0
    %298 = vmatpush1.xpose.msra.mxu0 0.0
    %299 = vmatprep.subr.mxu0 0.0
    %300 = vmatpush1.xpose.msra.mxu0 0.0
    %301 = vmatprep.subr.mxu0 0.0
    %302 = vmatpush1.xpose.msra.mxu0 0.0
    %303 = vmatprep.subr.mxu0 0.0
    %304 = vmatpush1.xpose.msra.mxu0 0.0
    %305 = vmatprep.subr.mxu0 0.0
    %306 = vmatpush1.xpose.msra.mxu0 0.0
    %307 = vmatprep.subr.mxu0 0.0
    %308 = vmatpush1.xpose.msra.mxu0 0.0
    %309 = vmatprep.subr.mxu0 0.0
    %310 = vmatpush1.xpose.msra.mxu0 0.0
    %311 = vmatprep.subr.mxu0 0.0
    %312 = vmatpush1.xpose.msra.mxu0 0.0
    %313 = vmatprep.subr.mxu0 0.0
    %314 = vmatpush1.xpose.msra.mxu0 0.0
    %315 = vmatprep.subr.mxu0 0.0
    %316 = vmatpush1.xpose.msra.mxu0 0.0
    %317 = vmatprep.subr.mxu0 0.0
    %318 = vmatpush1.xpose.msra.mxu0 0.0
    %319 = vmatprep.subr.mxu0 0.0
    %320 = vmatpush1.xpose.msra.mxu0 0.0
    %321 = vmatprep.subr.mxu0 0.0
    %322 = vmatpush1.xpose.msra.mxu0 0.0
    %323 = vmatprep.subr.mxu0 0.0
    %324 = vmatpush1.xpose.msra.mxu0 0.0
    %325 = vmatprep.subr.mxu0 0.0
    %326 = vmatpush1.xpose.msra.mxu0 0.0
    %327 = vmatprep.subr.mxu0 0.0
    %328 = vmatpush1.xpose.msra.mxu0 0.0
    %329 = vmatprep.subr.mxu0 0.0
    %330 = vmatpush1.xpose.msra.mxu0 0.0
    %331 = vmatprep.subr.mxu0 0.0
    %332 = vmatpush1.xpose.msra.mxu0 0.0
    %333 = vmatprep.mubr.f32.mxu0 0.0
    %334 = vmatmul.mubr.f32.gmra.mrb[0].mxu0 %v265
    %v335 = vpop.f32.mrb[0].mxu0
    %v336 = vadd.f32 0.0, %v335
    %v337 = vpop.f32.mrb[0].mxu0
    %338 = vdwg.mxu0
    %v339 = vmul.f32 %v336, 0.35355338
    %v340 = vsel %vm264, %v339, -inf
    %341 = vmax.xlane.f32.xlu0 %v340
    %v342 = vpop.xlane.xlu0 %341
    %v343 = vsub.f32 %v339, %v342
    %v344 = vmul.f32 %v343, 1.442695
    %v345 = vpow.pop %v344
    %v346 = vsel %vm264, %v345, 0.0
    %347 = vadd.xlane.f32.xlu0 %v346
    %v348 = vpop.xlane.xlu0 %347
    %v349 = vrcp.pop %v348
    %v350 = vmul.f32 %v345, %v349
    %351 = vrot.lane.b32.xlu0 %v253, 64
    %v352 = vpop.permute.xlu0 %351
    %v355 = vsel %vm264, %v350, 0
    %357 = vmatprep.subr.mxu0 0.0
    %358 = vmatpush1.msra.mxu0 %v352
    %359 = vmatprep.subr.mxu0 0.0
    %360 = vmatpush1.msra.mxu0 0.0
    %361 = vmatprep.subr.mxu0 0.0
    %362 = vmatpush1.msra.mxu0 0.0
    %363 = vmatprep.subr.mxu0 0.0
    %364 = vmatpush1.msra.mxu0 0.0
    %365 = vmatprep.subr.mxu0 0.0
    %366 = vmatpush1.msra.mxu0 0.0
    %367 = vmatprep.subr.mxu0 0.0
    %368 = vmatpush1.msra.mxu0 0.0
    %369 = vmatprep.subr.mxu0 0.0
    %370 = vmatpush1.msra.mxu0 0.0
    %371 = vmatprep.subr.mxu0 0.0
    %372 = vmatpush1.msra.mxu0 0.0
    %373 = vmatprep.subr.mxu0 0.0
    %374 = vmatpush1.msra.mxu0 0.0
    %375 = vmatprep.subr.mxu0 0.0
    %376 = vmatpush1.msra.mxu0 0.0
    %377 = vmatprep.subr.mxu0 0.0
    %378 = vmatpush1.msra.mxu0 0.0
    %379 = vmatprep.subr.mxu0 0.0
    %380 = vmatpush1.msra.mxu0 0.0
    %381 = vmatprep.subr.mxu0 0.0
    %382 = vmatpush1.msra.mxu0 0.0
    %383 = vmatprep.subr.mxu0 0.0
    %384 = vmatpush1.msra.mxu0 0.0
    %385 = vmatprep.subr.mxu0 0.0
    %386 = vmatpush1.msra.mxu0 0.0
    %387 = vmatprep.subr.mxu0 0.0
    %388 = vmatpush1.msra.mxu0 0.0
    %389 = vmatprep.subr.mxu0 0.0
    %390 = vmatpush1.msra.mxu0 0.0
    %391 = vmatprep.subr.mxu0 0.0
    %392 = vmatpush1.msra.mxu0 0.0
    %393 = vmatprep.subr.mxu0 0.0
    %394 = vmatpush1.msra.mxu0 0.0
    %395 = vmatprep.subr.mxu0 0.0
    %396 = vmatpush1.msra.mxu0 0.0
    %397 = vmatprep.subr.mxu0 0.0
    %398 = vmatpush1.msra.mxu0 0.0
    %399 = vmatprep.subr.mxu0 0.0
    %400 = vmatpush1.msra.mxu0 0.0
    %401 = vmatprep.subr.mxu0 0.0
    %402 = vmatpush1.msra.mxu0 0.0
    %403 = vmatprep.subr.mxu0 0.0
    %404 = vmatpush1.msra.mxu0 0.0
    %405 = vmatprep.subr.mxu0 0.0
    %406 = vmatpush1.msra.mxu0 0.0
    %407 = vmatprep.subr.mxu0 0.0
    %408 = vmatpush1.msra.mxu0 0.0
    %409 = vmatprep.subr.mxu0 0.0
    %410 = vmatpush1.msra.mxu0 0.0
    %411 = vmatprep.subr.mxu0 0.0
    %412 = vmatpush1.msra.mxu0 0.0
    %413 = vmatprep.subr.mxu0 0.0
    %414 = vmatpush1.msra.mxu0 0.0
    %415 = vmatprep.subr.mxu0 0.0
    %416 = vmatpush1.msra.mxu0 0.0
    %417 = vmatprep.subr.mxu0 0.0
    %418 = vmatpush1.msra.mxu0 0.0
    %419 = vmatprep.subr.mxu0 0.0
    %420 = vmatpush1.msra.mxu0 0.0
    %421 = vmatprep.mubr.f32.mxu0 0.0
    %422 = vmatmul.mubr.f32.gmra.mrb[0].mxu0 %v355
    %v423 = vpop.f32.mrb[0].mxu0
    %v424 = vadd.f32 0.0, %v423
    %v425 = vpop.f32.mrb[0].mxu0
    %426 = vdwg.mxu0
    %427 = vrot.lane.b32.xlu0 %v253, 120
    %v428 = vpop.permute.xlu0 %427
    %429 = vrot.lane.b32.xlu0 %v253, 88
    %v430 = vpop.permute.xlu0 %429
    %v431 = vsel %vm264, %v428, 0
    %v433 = vsel %vm264, %v430, 0
    %435 = vmatprep.subr.mxu0 0.0
    %436 = vmatpush1.xpose.msra.mxu0 %v433
    %437 = vmatprep.subr.mxu0 0.0
    %438 = vmatpush1.xpose.msra.mxu0 0.0
    %439 = vmatprep.subr.mxu0 0.0
    %440 = vmatpush1.xpose.msra.mxu0 0.0
    %441 = vmatprep.subr.mxu0 0.0
    %442 = vmatpush1.xpose.msra.mxu0 0.0
    %443 = vmatprep.subr.mxu0 0.0
    %444 = vmatpush1.xpose.msra.mxu0 0.0
    %445 = vmatprep.subr.mxu0 0.0
    %446 = vmatpush1.xpose.msra.mxu0 0.0
    %447 = vmatprep.subr.mxu0 0.0
    %448 = vmatpush1.xpose.msra.mxu0 0.0
    %449 = vmatprep.subr.mxu0 0.0
    %450 = vmatpush1.xpose.msra.mxu0 0.0
    %451 = vmatprep.subr.mxu0 0.0
    %452 = vmatpush1.xpose.msra.mxu0 0.0
    %453 = vmatprep.subr.mxu0 0.0
    %454 = vmatpush1.xpose.msra.mxu0 0.0
    %455 = vmatprep.subr.mxu0 0.0
    %456 = vmatpush1.xpose.msra.mxu0 0.0
    %457 = vmatprep.subr.mxu0 0.0
    %458 = vmatpush1.xpose.msra.mxu0 0.0
    %459 = vmatprep.subr.mxu0 0.0
    %460 = vmatpush1.xpose.msra.mxu0 0.0
    %461 = vmatprep.subr.mxu0 0.0
    %462 = vmatpush1.xpose.msra.mxu0 0.0
    %463 = vmatprep.subr.mxu0 0.0
    %464 = vmatpush1.xpose.msra.mxu0 0.0
    %465 = vmatprep.subr.mxu0 0.0
    %466 = vmatpush1.xpose.msra.mxu0 0.0
    %467 = vmatprep.subr.mxu0 0.0
    %468 = vmatpush1.xpose.msra.mxu0 0.0
    %469 = vmatprep.subr.mxu0 0.0
    %470 = vmatpush1.xpose.msra.mxu0 0.0
    %471 = vmatprep.subr.mxu0 0.0
    %472 = vmatpush1.xpose.msra.mxu0 0.0
    %473 = vmatprep.subr.mxu0 0.0
    %474 = vmatpush1.xpose.msra.mxu0 0.0
    %475 = vmatprep.subr.mxu0 0.0
    %476 = vmatpush1.xpose.msra.mxu0 0.0
    %477 = vmatprep.subr.mxu0 0.0
    %478 = vmatpush1.xpose.msra.mxu0 0.0
    %479 = vmatprep.subr.mxu0 0.0
    %480 = vmatpush1.xpose.msra.mxu0 0.0
    %481 = vmatprep.subr.mxu0 0.0
    %482 = vmatpush1.xpose.msra.mxu0 0.0
    %483 = vmatprep.subr.mxu0 0.0
    %484 = vmatpush1.xpose.msra.mxu0 0.0
    %485 = vmatprep.subr.mxu0 0.0
    %486 = vmatpush1.xpose.msra.mxu0 0.0
    %487 = vmatprep.subr.mxu0 0.0
    %488 = vmatpush1.xpose.msra.mxu0 0.0
    %489 = vmatprep.subr.mxu0 0.0
    %490 = vmatpush1.xpose.msra.mxu0 0.0
    %491 = vmatprep.subr.mxu0 0.0
    %492 = vmatpush1.xpose.msra.mxu0 0.0
    %493 = vmatprep.subr.mxu0 0.0
    %494 = vmatpush1.xpose.msra.mxu0 0.0
    %495 = vmatprep.subr.mxu0 0.0
    %496 = vmatpush1.xpose.msra.mxu0 0.0
    %497 = vmatprep.subr.mxu0 0.0
    %498 = vmatpush1.xpose.msra.mxu0 0.0
    %499 = vmatprep.mubr.f32.mxu0 0.0
    %500 = vmatmul.mubr.f32.gmra.mrb[0].mxu0 %v431
    %v501 = vpop.f32.mrb[0].mxu0
    %v502 = vadd.f32 0.0, %v501
    %v503 = vpop.f32.mrb[0].mxu0
    %504 = vdwg.mxu0
    %v505 = vmul.f32 %v502, 0.35355338
    %v506 = vsel %vm264, %v505, -inf
    %507 = vmax.xlane.f32.xlu0 %v506
    %v508 = vpop.xlane.xlu0 %507
    %v509 = vsub.f32 %v505, %v508
    %v510 = vmul.f32 %v509, 1.442695
    %v511 = vpow.pop %v510
    %v512 = vsel %vm264, %v511, 0.0
    %513 = vadd.xlane.f32.xlu0 %v512
    %v514 = vpop.xlane.xlu0 %513
    %v515 = vrcp.pop %v514
    %v516 = vmul.f32 %v511, %v515
    %517 = vrot.lane.b32.xlu0 %v253, 56
    %v518 = vpop.permute.xlu0 %517
    %v521 = vsel %vm264, %v516, 0
    %523 = vmatprep.subr.mxu0 0.0
    %524 = vmatpush1.msra.mxu0 %v518
    %525 = vmatprep.subr.mxu0 0.0
    %526 = vmatpush1.msra.mxu0 0.0
    %527 = vmatprep.subr.mxu0 0.0
    %528 = vmatpush1.msra.mxu0 0.0
    %529 = vmatprep.subr.mxu0 0.0
    %530 = vmatpush1.msra.mxu0 0.0
    %531 = vmatprep.subr.mxu0 0.0
    %532 = vmatpush1.msra.mxu0 0.0
    %533 = vmatprep.subr.mxu0 0.0
    %534 = vmatpush1.msra.mxu0 0.0
    %535 = vmatprep.subr.mxu0 0.0
    %536 = vmatpush1.msra.mxu0 0.0
    %537 = vmatprep.subr.mxu0 0.0
    %538 = vmatpush1.msra.mxu0 0.0
    %539 = vmatprep.subr.mxu0 0.0
    %540 = vmatpush1.msra.mxu0 0.0
    %541 = vmatprep.subr.mxu0 0.0
    %542 = vmatpush1.msra.mxu0 0.0
    %543 = vmatprep.subr.mxu0 0.0
    %544 = vmatpush1.msra.mxu0 0.0
    %545 = vmatprep.subr.mxu0 0.0
    %546 = vmatpush1.msra.mxu0 0.0
    %547 = vmatprep.subr.mxu0 0.0
    %548 = vmatpush1.msra.mxu0 0.0
    %549 = vmatprep.subr.mxu0 0.0
    %550 = vmatpush1.msra.mxu0 0.0
    %551 = vmatprep.subr.mxu0 0.0
    %552 = vmatpush1.msra.mxu0 0.0
    %553 = vmatprep.subr.mxu0 0.0
    %554 = vmatpush1.msra.mxu0 0.0
    %555 = vmatprep.subr.mxu0 0.0
    %556 = vmatpush1.msra.mxu0 0.0
    %557 = vmatprep.subr.mxu0 0.0
    %558 = vmatpush1.msra.mxu0 0.0
    %559 = vmatprep.subr.mxu0 0.0
    %560 = vmatpush1.msra.mxu0 0.0
    %561 = vmatprep.subr.mxu0 0.0
    %562 = vmatpush1.msra.mxu0 0.0
    %563 = vmatprep.subr.mxu0 0.0
    %564 = vmatpush1.msra.mxu0 0.0
    %565 = vmatprep.subr.mxu0 0.0
    %566 = vmatpush1.msra.mxu0 0.0
    %567 = vmatprep.subr.mxu0 0.0
    %568 = vmatpush1.msra.mxu0 0.0
    %569 = vmatprep.subr.mxu0 0.0
    %570 = vmatpush1.msra.mxu0 0.0
    %571 = vmatprep.subr.mxu0 0.0
    %572 = vmatpush1.msra.mxu0 0.0
    %573 = vmatprep.subr.mxu0 0.0
    %574 = vmatpush1.msra.mxu0 0.0
    %575 = vmatprep.subr.mxu0 0.0
    %576 = vmatpush1.msra.mxu0 0.0
    %577 = vmatprep.subr.mxu0 0.0
    %578 = vmatpush1.msra.mxu0 0.0
    %579 = vmatprep.subr.mxu0 0.0
    %580 = vmatpush1.msra.mxu0 0.0
    %581 = vmatprep.subr.mxu0 0.0
    %582 = vmatpush1.msra.mxu0 0.0
    %583 = vmatprep.subr.mxu0 0.0
    %584 = vmatpush1.msra.mxu0 0.0
    %585 = vmatprep.subr.mxu0 0.0
    %586 = vmatpush1.msra.mxu0 0.0
    %587 = vmatprep.mubr.f32.mxu0 0.0
    %588 = vmatmul.mubr.f32.gmra.mrb[0].mxu0 %v521
    %v589 = vpop.f32.mrb[0].mxu0
    %v590 = vadd.f32 0.0, %v589
    %v591 = vpop.f32.mrb[0].mxu0
    %592 = vdwg.mxu0
    %593 = vrot.lane.b32.xlu0 %v253, 112
    %v594 = vpop.permute.xlu0 %593
    %595 = vrot.lane.b32.xlu0 %v253, 80
    %v596 = vpop.permute.xlu0 %595
    %v597 = vsel %vm264, %v594, 0
    %v599 = vsel %vm264, %v596, 0
    %601 = vmatprep.subr.mxu0 0.0
    %602 = vmatpush1.xpose.msra.mxu0 %v599
    %603 = vmatprep.subr.mxu0 0.0
    %604 = vmatpush1.xpose.msra.mxu0 0.0
    %605 = vmatprep.subr.mxu0 0.0
    %606 = vmatpush1.xpose.msra.mxu0 0.0
    %607 = vmatprep.subr.mxu0 0.0
    %608 = vmatpush1.xpose.msra.mxu0 0.0
    %609 = vmatprep.subr.mxu0 0.0
    %610 = vmatpush1.xpose.msra.mxu0 0.0
    %611 = vmatprep.subr.mxu0 0.0
    %612 = vmatpush1.xpose.msra.mxu0 0.0
    %613 = vmatprep.subr.mxu0 0.0
    %614 = vmatpush1.xpose.msra.mxu0 0.0
    %615 = vmatprep.subr.mxu0 0.0
    %616 = vmatpush1.xpose.msra.mxu0 0.0
    %617 = vmatprep.subr.mxu0 0.0
    %618 = vmatpush1.xpose.msra.mxu0 0.0
    %619 = vmatprep.subr.mxu0 0.0
    %620 = vmatpush1.xpose.msra.mxu0 0.0
    %621 = vmatprep.subr.mxu0 0.0
    %622 = vmatpush1.xpose.msra.mxu0 0.0
    %623 = vmatprep.subr.mxu0 0.0
    %624 = vmatpush1.xpose.msra.mxu0 0.0
    %625 = vmatprep.subr.mxu0 0.0
    %626 = vmatpush1.xpose.msra.mxu0 0.0
    %627 = vmatprep.subr.mxu0 0.0
    %628 = vmatpush1.xpose.msra.mxu0 0.0
    %629 = vmatprep.subr.mxu0 0.0
    %630 = vmatpush1.xpose.msra.mxu0 0.0
    %631 = vmatprep.subr.mxu0 0.0
    %632 = vmatpush1.xpose.msra.mxu0 0.0
    %633 = vmatprep.subr.mxu0 0.0
    %634 = vmatpush1.xpose.msra.mxu0 0.0
    %635 = vmatprep.subr.mxu0 0.0
    %636 = vmatpush1.xpose.msra.mxu0 0.0
    %637 = vmatprep.subr.mxu0 0.0
    %638 = vmatpush1.xpose.msra.mxu0 0.0
    %639 = vmatprep.subr.mxu0 0.0
    %640 = vmatpush1.xpose.msra.mxu0 0.0
    %641 = vmatprep.subr.mxu0 0.0
    %642 = vmatpush1.xpose.msra.mxu0 0.0
    %643 = vmatprep.subr.mxu0 0.0
    %644 = vmatpush1.xpose.msra.mxu0 0.0
    %645 = vmatprep.subr.mxu0 0.0
    %646 = vmatpush1.xpose.msra.mxu0 0.0
    %647 = vmatprep.subr.mxu0 0.0
    %648 = vmatpush1.xpose.msra.mxu0 0.0
    %649 = vmatprep.subr.mxu0 0.0
    %650 = vmatpush1.xpose.msra.mxu0 0.0
    %651 = vmatprep.subr.mxu0 0.0
    %652 = vmatpush1.xpose.msra.mxu0 0.0
    %653 = vmatprep.subr.mxu0 0.0
    %654 = vmatpush1.xpose.msra.mxu0 0.0
    %655 = vmatprep.subr.mxu0 0.0
    %656 = vmatpush1.xpose.msra.mxu0 0.0
    %657 = vmatprep.subr.mxu0 0.0
    %658 = vmatpush1.xpose.msra.mxu0 0.0
    %659 = vmatprep.subr.mxu0 0.0
    %660 = vmatpush1.xpose.msra.mxu0 0.0
    %661 = vmatprep.subr.mxu0 0.0
    %662 = vmatpush1.xpose.msra.mxu0 0.0
    %663 = vmatprep.subr.mxu0 0.0
    %664 = vmatpush1.xpose.msra.mxu0 0.0
    %665 = vmatprep.mubr.f32.mxu0 0.0
    %666 = vmatmul.mubr.f32.gmra.mrb[0].mxu0 %v597
    %v667 = vpop.f32.mrb[0].mxu0
    %v668 = vadd.f32 0.0, %v667
    %v669 = vpop.f32.mrb[0].mxu0
    %670 = vdwg.mxu0
    %v671 = vmul.f32 %v668, 0.35355338
    %v672 = vsel %vm264, %v671, -inf
    %673 = vmax.xlane.f32.xlu0 %v672
    %v674 = vpop.xlane.xlu0 %673
    %v675 = vsub.f32 %v671, %v674
    %v676 = vmul.f32 %v675, 1.442695
    %v677 = vpow.pop %v676
    %v678 = vsel %vm264, %v677, 0.0
    %679 = vadd.xlane.f32.xlu0 %v678
    %v680 = vpop.xlane.xlu0 %679
    %v681 = vrcp.pop %v680
    %v682 = vmul.f32 %v677, %v681
    %683 = vrot.lane.b32.xlu0 %v253, 48
    %v684 = vpop.permute.xlu0 %683
    %v687 = vsel %vm264, %v682, 0
    %689 = vmatprep.subr.mxu0 0.0
    %690 = vmatpush1.msra.mxu0 %v684
    %691 = vmatprep.subr.mxu0 0.0
    %692 = vmatpush1.msra.mxu0 0.0
    %693 = vmatprep.subr.mxu0 0.0
    %694 = vmatpush1.msra.mxu0 0.0
    %695 = vmatprep.subr.mxu0 0.0
    %696 = vmatpush1.msra.mxu0 0.0
    %697 = vmatprep.subr.mxu0 0.0
    %698 = vmatpush1.msra.mxu0 0.0
    %699 = vmatprep.subr.mxu0 0.0
    %700 = vmatpush1.msra.mxu0 0.0
    %701 = vmatprep.subr.mxu0 0.0
    %702 = vmatpush1.msra.mxu0 0.0
    %703 = vmatprep.subr.mxu0 0.0
    %704 = vmatpush1.msra.mxu0 0.0
    %705 = vmatprep.subr.mxu0 0.0
    %706 = vmatpush1.msra.mxu0 0.0
    %707 = vmatprep.subr.mxu0 0.0
    %708 = vmatpush1.msra.mxu0 0.0
    %709 = vmatprep.subr.mxu0 0.0
    %710 = vmatpush1.msra.mxu0 0.0
    %711 = vmatprep.subr.mxu0 0.0
    %712 = vmatpush1.msra.mxu0 0.0
    %713 = vmatprep.subr.mxu0 0.0
    %714 = vmatpush1.msra.mxu0 0.0
    %715 = vmatprep.subr.mxu0 0.0
    %716 = vmatpush1.msra.mxu0 0.0
    %717 = vmatprep.subr.mxu0 0.0
    %718 = vmatpush1.msra.mxu0 0.0
    %719 = vmatprep.subr.mxu0 0.0
    %720 = vmatpush1.msra.mxu0 0.0
    %721 = vmatprep.subr.mxu0 0.0
    %722 = vmatpush1.msra.mxu0 0.0
    %723 = vmatprep.subr.mxu0 0.0
    %724 = vmatpush1.msra.mxu0 0.0
    %725 = vmatprep.subr.mxu0 0.0
    %726 = vmatpush1.msra.mxu0 0.0
    %727 = vmatprep.subr.mxu0 0.0
    %728 = vmatpush1.msra.mxu0 0.0
    %729 = vmatprep.subr.mxu0 0.0
    %730 = vmatpush1.msra.mxu0 0.0
    %731 = vmatprep.subr.mxu0 0.0
    %732 = vmatpush1.msra.mxu0 0.0
    %733 = vmatprep.subr.mxu0 0.0
    %734 = vmatpush1.msra.mxu0 0.0
    %735 = vmatprep.subr.mxu0 0.0
    %736 = vmatpush1.msra.mxu0 0.0
    %737 = vmatprep.subr.mxu0 0.0
    %738 = vmatpush1.msra.mxu0 0.0
    %739 = vmatprep.subr.mxu0 0.0
    %740 = vmatpush1.msra.mxu0 0.0
    %741 = vmatprep.subr.mxu0 0.0
    %742 = vmatpush1.msra.mxu0 0.0
    %743 = vmatprep.subr.mxu0 0.0
    %744 = vmatpush1.msra.mxu0 0.0
    %745 = vmatprep.subr.mxu0 0.0
    %746 = vmatpush1.msra.mxu0 0.0
    %747 = vmatprep.subr.mxu0 0.0
    %748 = vmatpush1.msra.mxu0 0.0
    %749 = vmatprep.subr.mxu0 0.0
    %750 = vmatpush1.msra.mxu0 0.0
    %751 = vmatprep.subr.mxu0 0.0
    %752 = vmatpush1.msra.mxu0 0.0
    %753 = vmatprep.mubr.f32.mxu0 0.0
    %754 = vmatmul.mubr.f32.gmra.mrb[0].mxu0 %v687
    %v755 = vpop.f32.mrb[0].mxu0
    %v756 = vadd.f32 0.0, %v755
    %v757 = vpop.f32.mrb[0].mxu0
    %758 = vdwg.mxu0
    %759 = vrot.lane.b32.xlu0 %v253, 104
    %v760 = vpop.permute.xlu0 %759
    %761 = vrot.lane.b32.xlu0 %v253, 72
    %v762 = vpop.permute.xlu0 %761
    %v763 = vsel %vm264, %v760, 0
    %v765 = vsel %vm264, %v762, 0
    %767 = vmatprep.subr.mxu0 0.0
    %768 = vmatpush1.xpose.msra.mxu0 %v765
    %769 = vmatprep.subr.mxu0 0.0
    %770 = vmatpush1.xpose.msra.mxu0 0.0
    %771 = vmatprep.subr.mxu0 0.0
    %772 = vmatpush1.xpose.msra.mxu0 0.0
    %773 = vmatprep.subr.mxu0 0.0
    %774 = vmatpush1.xpose.msra.mxu0 0.0
    %775 = vmatprep.subr.mxu0 0.0
    %776 = vmatpush1.xpose.msra.mxu0 0.0
    %777 = vmatprep.subr.mxu0 0.0
    %778 = vmatpush1.xpose.msra.mxu0 0.0
    %779 = vmatprep.subr.mxu0 0.0
    %780 = vmatpush1.xpose.msra.mxu0 0.0
    %781 = vmatprep.subr.mxu0 0.0
    %782 = vmatpush1.xpose.msra.mxu0 0.0
    %783 = vmatprep.subr.mxu0 0.0
    %784 = vmatpush1.xpose.msra.mxu0 0.0
    %785 = vmatprep.subr.mxu0 0.0
    %786 = vmatpush1.xpose.msra.mxu0 0.0
    %787 = vmatprep.subr.mxu0 0.0
    %788 = vmatpush1.xpose.msra.mxu0 0.0
    %789 = vmatprep.subr.mxu0 0.0
    %790 = vmatpush1.xpose.msra.mxu0 0.0
    %791 = vmatprep.subr.mxu0 0.0
    %792 = vmatpush1.xpose.msra.mxu0 0.0
    %793 = vmatprep.subr.mxu0 0.0
    %794 = vmatpush1.xpose.msra.mxu0 0.0
    %795 = vmatprep.subr.mxu0 0.0
    %796 = vmatpush1.xpose.msra.mxu0 0.0
    %797 = vmatprep.subr.mxu0 0.0
    %798 = vmatpush1.xpose.msra.mxu0 0.0
    %799 = vmatprep.subr.mxu0 0.0
    %800 = vmatpush1.xpose.msra.mxu0 0.0
    %801 = vmatprep.subr.mxu0 0.0
    %802 = vmatpush1.xpose.msra.mxu0 0.0
    %803 = vmatprep.subr.mxu0 0.0
    %804 = vmatpush1.xpose.msra.mxu0 0.0
    %805 = vmatprep.subr.mxu0 0.0
    %806 = vmatpush1.xpose.msra.mxu0 0.0
    %807 = vmatprep.subr.mxu0 0.0
    %808 = vmatpush1.xpose.msra.mxu0 0.0
    %809 = vmatprep.subr.mxu0 0.0
    %810 = vmatpush1.xpose.msra.mxu0 0.0
    %811 = vmatprep.subr.mxu0 0.0
    %812 = vmatpush1.xpose.msra.mxu0 0.0
    %813 = vmatprep.subr.mxu0 0.0
    %814 = vmatpush1.xpose.msra.mxu0 0.0
    %815 = vmatprep.subr.mxu0 0.0
    %816 = vmatpush1.xpose.msra.mxu0 0.0
    %817 = vmatprep.subr.mxu0 0.0
    %818 = vmatpush1.xpose.msra.mxu0 0.0
    %819 = vmatprep.subr.mxu0 0.0
    %820 = vmatpush1.xpose.msra.mxu0 0.0
    %821 = vmatprep.subr.mxu0 0.0
    %822 = vmatpush1.xpose.msra.mxu0 0.0
    %823 = vmatprep.subr.mxu0 0.0
    %824 = vmatpush1.xpose.msra.mxu0 0.0
    %825 = vmatprep.subr.mxu0 0.0
    %826 = vmatpush1.xpose.msra.mxu0 0.0
    %827 = vmatprep.subr.mxu0 0.0
    %828 = vmatpush1.xpose.msra.mxu0 0.0
    %829 = vmatprep.subr.mxu0 0.0
    %830 = vmatpush1.xpose.msra.mxu0 0.0
    %831 = vmatprep.mubr.f32.mxu0 0.0
    %832 = vmatmul.mubr.f32.gmra.mrb[0].mxu0 %v763
    %v833 = vpop.f32.mrb[0].mxu0
    %v834 = vadd.f32 0.0, %v833
    %v835 = vpop.f32.mrb[0].mxu0
    %836 = vdwg.mxu0
    %v837 = vmul.f32 %v834, 0.35355338
    %v838 = vsel %vm264, %v837, -inf
    %839 = vmax.xlane.f32.xlu0 %v838
    %v840 = vpop.xlane.xlu0 %839
    %v841 = vsub.f32 %v837, %v840
    %v842 = vmul.f32 %v841, 1.442695
    %v843 = vpow.pop %v842
    %v844 = vsel %vm264, %v843, 0.0
    %845 = vadd.xlane.f32.xlu0 %v844
    %v846 = vpop.xlane.xlu0 %845
    %v847 = vrcp.pop %v846
    %v848 = vmul.f32 %v843, %v847
    %849 = vrot.lane.b32.xlu0 %v253, 40
    %v850 = vpop.permute.xlu0 %849
    %v853 = vsel %vm264, %v848, 0
    %855 = vmatprep.subr.mxu0 0.0
    %856 = vmatpush1.msra.mxu0 %v850
    %857 = vmatprep.subr.mxu0 0.0
    %858 = vmatpush1.msra.mxu0 0.0
    %859 = vmatprep.subr.mxu0 0.0
    %860 = vmatpush1.msra.mxu0 0.0
    %861 = vmatprep.subr.mxu0 0.0
    %862 = vmatpush1.msra.mxu0 0.0
    %863 = vmatprep.subr.mxu0 0.0
    %864 = vmatpush1.msra.mxu0 0.0
    %865 = vmatprep.subr.mxu0 0.0
    %866 = vmatpush1.msra.mxu0 0.0
    %867 = vmatprep.subr.mxu0 0.0
    %868 = vmatpush1.msra.mxu0 0.0
    %869 = vmatprep.subr.mxu0 0.0
    %870 = vmatpush1.msra.mxu0 0.0
    %871 = vmatprep.subr.mxu0 0.0
    %872 = vmatpush1.msra.mxu0 0.0
    %873 = vmatprep.subr.mxu0 0.0
    %874 = vmatpush1.msra.mxu0 0.0
    %875 = vmatprep.subr.mxu0 0.0
    %876 = vmatpush1.msra.mxu0 0.0
    %877 = vmatprep.subr.mxu0 0.0
    %878 = vmatpush1.msra.mxu0 0.0
    %879 = vmatprep.subr.mxu0 0.0
    %880 = vmatpush1.msra.mxu0 0.0
    %881 = vmatprep.subr.mxu0 0.0
    %882 = vmatpush1.msra.mxu0 0.0
    %883 = vmatprep.subr.mxu0 0.0
    %884 = vmatpush1.msra.mxu0 0.0
    %885 = vmatprep.subr.mxu0 0.0
    %886 = vmatpush1.msra.mxu0 0.0
    %887 = vmatprep.subr.mxu0 0.0
    %888 = vmatpush1.msra.mxu0 0.0
    %889 = vmatprep.subr.mxu0 0.0
    %890 = vmatpush1.msra.mxu0 0.0
    %891 = vmatprep.subr.mxu0 0.0
    %892 = vmatpush1.msra.mxu0 0.0
    %893 = vmatprep.subr.mxu0 0.0
    %894 = vmatpush1.msra.mxu0 0.0
    %895 = vmatprep.subr.mxu0 0.0
    %896 = vmatpush1.msra.mxu0 0.0
    %897 = vmatprep.subr.mxu0 0.0
    %898 = vmatpush1.msra.mxu0 0.0
    %899 = vmatprep.subr.mxu0 0.0
    %900 = vmatpush1.msra.mxu0 0.0
    %901 = vmatprep.subr.mxu0 0.0
    %902 = vmatpush1.msra.mxu0 0.0
    %903 = vmatprep.subr.mxu0 0.0
    %904 = vmatpush1.msra.mxu0 0.0
    %905 = vmatprep.subr.mxu0 0.0
    %906 = vmatpush1.msra.mxu0 0.0
    %907 = vmatprep.subr.mxu0 0.0
    %908 = vmatpush1.msra.mxu0 0.0
    %909 = vmatprep.subr.mxu0 0.0
    %910 = vmatpush1.msra.mxu0 0.0
    %911 = vmatprep.subr.mxu0 0.0
    %912 = vmatpush1.msra.mxu0 0.0
    %913 = vmatprep.subr.mxu0 0.0
    %914 = vmatpush1.msra.mxu0 0.0
    %915 = vmatprep.subr.mxu0 0.0
    %916 = vmatpush1.msra.mxu0 0.0
    %917 = vmatprep.subr.mxu0 0.0
    %918 = vmatpush1.msra.mxu0 0.0
    %919 = vmatprep.mubr.f32.mxu0 0.0
    %920 = vmatmul.mubr.f32.gmra.mrb[0].mxu0 %v853
    %v921 = vpop.f32.mrb[0].mxu0
    %v922 = vadd.f32 0.0, %v921
    %v923 = vpop.f32.mrb[0].mxu0
    %924 = vdwg.mxu0
    %926 = vrot.lane.b32.xlu0 %v590, 8
    %v927 = vpop.permute.xlu0 %926
    %930 = vrot.lane.b32.xlu0 %v756, 16
    %v931 = vpop.permute.xlu0 %930
    %934 = vrot.lane.b32.xlu0 %v922, 24
    %v935 = vpop.permute.xlu0 %934
    %v937 = vsel %vm264, %v424, %v927
    %vm938 = vcmask 130048
    %v939 = vsel %vm938, %v937, %v931
    %vm940 = vcmask 195584
    %v941 = vsel %vm940, %v939, %v935
    %943 = vrot.lane.b32.xlu0 %v258, 96
    %v944 = vpop.permute.xlu0 %943
    %v945 = vsel %vm264, %v258, 0
    %v947 = vsel %vm264, %v944, 0
    %949 = vmatprep.subr.mxu0 0.0
    %950 = vmatpush1.xpose.msra.mxu0 %v947
    %951 = vmatprep.subr.mxu0 0.0
    %952 = vmatpush1.xpose.msra.mxu0 0.0
    %953 = vmatprep.subr.mxu0 0.0
    %954 = vmatpush1.xpose.msra.mxu0 0.0
    %955 = vmatprep.subr.mxu0 0.0
    %956 = vmatpush1.xpose.msra.mxu0 0.0
    %957 = vmatprep.subr.mxu0 0.0
    %958 = vmatpush1.xpose.msra.mxu0 0.0
    %959 = vmatprep.subr.mxu0 0.0
    %960 = vmatpush1.xpose.msra.mxu0 0.0
    %961 = vmatprep.subr.mxu0 0.0
    %962 = vmatpush1.xpose.msra.mxu0 0.0
    %963 = vmatprep.subr.mxu0 0.0
    %964 = vmatpush1.xpose.msra.mxu0 0.0
    %965 = vmatprep.subr.mxu0 0.0
    %966 = vmatpush1.xpose.msra.mxu0 0.0
    %967 = vmatprep.subr.mxu0 0.0
    %968 = vmatpush1.xpose.msra.mxu0 0.0
    %969 = vmatprep.subr.mxu0 0.0
    %970 = vmatpush1.xpose.msra.mxu0 0.0
    %971 = vmatprep.subr.mxu0 0.0
    %972 = vmatpush1.xpose.msra.mxu0 0.0
    %973 = vmatprep.subr.mxu0 0.0
    %974 = vmatpush1.xpose.msra.mxu0 0.0
    %975 = vmatprep.subr.mxu0 0.0
    %976 = vmatpush1.xpose.msra.mxu0 0.0
    %977 = vmatprep.subr.mxu0 0.0
    %978 = vmatpush1.xpose.msra.mxu0 0.0
    %979 = vmatprep.subr.mxu0 0.0
    %980 = vmatpush1.xpose.msra.mxu0 0.0
    %981 = vmatprep.subr.mxu0 0.0
    %982 = vmatpush1.xpose.msra.mxu0 0.0
    %983 = vmatprep.subr.mxu0 0.0
    %984 = vmatpush1.xpose.msra.mxu0 0.0
    %985 = vmatprep.subr.mxu0 0.0
    %986 = vmatpush1.xpose.msra.mxu0 0.0
    %987 = vmatprep.subr.mxu0 0.0
    %988 = vmatpush1.xpose.msra.mxu0 0.0
    %989 = vmatprep.subr.mxu0 0.0
    %990 = vmatpush1.xpose.msra.mxu0 0.0
    %991 = vmatprep.subr.mxu0 0.0
    %992 = vmatpush1.xpose.msra.mxu0 0.0
    %993 = vmatprep.subr.mxu0 0.0
    %994 = vmatpush1.xpose.msra.mxu0 0.0
    %995 = vmatprep.subr.mxu0 0.0
    %996 = vmatpush1.xpose.msra.mxu0 0.0
    %997 = vmatprep.subr.mxu0 0.0
    %998 = vmatpush1.xpose.msra.mxu0 0.0
    %999 = vmatprep.subr.mxu0 0.0
    %1000 = vmatpush1.xpose.msra.mxu0 0.0
    %1001 = vmatprep.subr.mxu0 0.0
    %1002 = vmatpush1.xpose.msra.mxu0 0.0
    %1003 = vmatprep.subr.mxu0 0.0
    %1004 = vmatpush1.xpose.msra.mxu0 0.0
    %1005 = vmatprep.subr.mxu0 0.0
    %1006 = vmatpush1.xpose.msra.mxu0 0.0
    %1007 = vmatprep.subr.mxu0 0.0
    %1008 = vmatpush1.xpose.msra.mxu0 0.0
    %1009 = vmatprep.subr.mxu0 0.0
    %1010 = vmatpush1.xpose.msra.mxu0 0.0
    %1011 = vmatprep.subr.mxu0 0.0
    %1012 = vmatpush1.xpose.msra.mxu0 0.0
    %1013 = vmatprep.mubr.f32.mxu0 0.0
    %1014 = vmatmul.mubr.f32.gmra.mrb[0].mxu0 %v945
    %v1015 = vpop.f32.mrb[0].mxu0
    %v1016 = vadd.f32 0.0, %v1015
    %v1017 = vpop.f32.mrb[0].mxu0
    %1018 = vdwg.mxu0
    %v1019 = vmul.f32 %v1016, 0.35355338
    %v1020 = vsel %vm264, %v1019, -inf
    %1021 = vmax.xlane.f32.xlu0 %v1020
    %v1022 = vpop.xlane.xlu0 %1021
    %v1023 = vsub.f32 %v1019, %v1022
    %v1024 = vmul.f32 %v1023, 1.442695
    %v1025 = vpow.pop %v1024
    %v1026 = vsel %vm264, %v1025, 0.0
    %1027 = vadd.xlane.f32.xlu0 %v1026
    %v1028 = vpop.xlane.xlu0 %1027
    %v1029 = vrcp.pop %v1028
    %v1030 = vmul.f32 %v1025, %v1029
    %1031 = vrot.lane.b32.xlu0 %v258, 64
    %v1032 = vpop.permute.xlu0 %1031
    %v1035 = vsel %vm264, %v1030, 0
    %1037 = vmatprep.subr.mxu0 0.0
    %1038 = vmatpush1.msra.mxu0 %v1032
    %1039 = vmatprep.subr.mxu0 0.0
    %1040 = vmatpush1.msra.mxu0 0.0
    %1041 = vmatprep.subr.mxu0 0.0
    %1042 = vmatpush1.msra.mxu0 0.0
    %1043 = vmatprep.subr.mxu0 0.0
    %1044 = vmatpush1.msra.mxu0 0.0
    %1045 = vmatprep.subr.mxu0 0.0
    %1046 = vmatpush1.msra.mxu0 0.0
    %1047 = vmatprep.subr.mxu0 0.0
    %1048 = vmatpush1.msra.mxu0 0.0
    %1049 = vmatprep.subr.mxu0 0.0
    %1050 = vmatpush1.msra.mxu0 0.0
    %1051 = vmatprep.subr.mxu0 0.0
    %1052 = vmatpush1.msra.mxu0 0.0
    %1053 = vmatprep.subr.mxu0 0.0
    %1054 = vmatpush1.msra.mxu0 0.0
    %1055 = vmatprep.subr.mxu0 0.0
    %1056 = vmatpush1.msra.mxu0 0.0
    %1057 = vmatprep.subr.mxu0 0.0
    %1058 = vmatpush1.msra.mxu0 0.0
    %1059 = vmatprep.subr.mxu0 0.0
    %1060 = vmatpush1.msra.mxu0 0.0
    %1061 = vmatprep.subr.mxu0 0.0
    %1062 = vmatpush1.msra.mxu0 0.0
    %1063 = vmatprep.subr.mxu0 0.0
    %1064 = vmatpush1.msra.mxu0 0.0
    %1065 = vmatprep.subr.mxu0 0.0
    %1066 = vmatpush1.msra.mxu0 0.0
    %1067 = vmatprep.subr.mxu0 0.0
    %1068 = vmatpush1.msra.mxu0 0.0
    %1069 = vmatprep.subr.mxu0 0.0
    %1070 = vmatpush1.msra.mxu0 0.0
    %1071 = vmatprep.subr.mxu0 0.0
    %1072 = vmatpush1.msra.mxu0 0.0
    %1073 = vmatprep.subr.mxu0 0.0
    %1074 = vmatpush1.msra.mxu0 0.0
    %1075 = vmatprep.subr.mxu0 0.0
    %1076 = vmatpush1.msra.mxu0 0.0
    %1077 = vmatprep.subr.mxu0 0.0
    %1078 = vmatpush1.msra.mxu0 0.0
    %1079 = vmatprep.subr.mxu0 0.0
    %1080 = vmatpush1.msra.mxu0 0.0
    %1081 = vmatprep.subr.mxu0 0.0
    %1082 = vmatpush1.msra.mxu0 0.0
    %1083 = vmatprep.subr.mxu0 0.0
    %1084 = vmatpush1.msra.mxu0 0.0
    %1085 = vmatprep.subr.mxu0 0.0
    %1086 = vmatpush1.msra.mxu0 0.0
    %1087 = vmatprep.subr.mxu0 0.0
    %1088 = vmatpush1.msra.mxu0 0.0
    %1089 = vmatprep.subr.mxu0 0.0
    %1090 = vmatpush1.msra.mxu0 0.0
    %1091 = vmatprep.subr.mxu0 0.0
    %1092 = vmatpush1.msra.mxu0 0.0
    %1093 = vmatprep.subr.mxu0 0.0
    %1094 = vmatpush1.msra.mxu0 0.0
    %1095 = vmatprep.subr.mxu0 0.0
    %1096 = vmatpush1.msra.mxu0 0.0
    %1097 = vmatprep.subr.mxu0 0.0
    %1098 = vmatpush1.msra.mxu0 0.0
    %1099 = vmatprep.subr.mxu0 0.0
    %1100 = vmatpush1.msra.mxu0 0.0
    %1101 = vmatprep.mubr.f32.mxu0 0.0
    %1102 = vmatmul.mubr.f32.gmra.mrb[0].mxu0 %v1035
    %v1103 = vpop.f32.mrb[0].mxu0
    %v1104 = vadd.f32 0.0, %v1103
    %v1105 = vpop.f32.mrb[0].mxu0
    %1106 = vdwg.mxu0
    %1107 = vrot.lane.b32.xlu0 %v258, 120
    %v1108 = vpop.permute.xlu0 %1107
    %1109 = vrot.lane.b32.xlu0 %v258, 88
    %v1110 = vpop.permute.xlu0 %1109
    %v1111 = vsel %vm264, %v1108, 0
    %v1113 = vsel %vm264, %v1110, 0
    %1115 = vmatprep.subr.mxu0 0.0
    %1116 = vmatpush1.xpose.msra.mxu0 %v1113
    %1117 = vmatprep.subr.mxu0 0.0
    %1118 = vmatpush1.xpose.msra.mxu0 0.0
    %1119 = vmatprep.subr.mxu0 0.0
    %1120 = vmatpush1.xpose.msra.mxu0 0.0
    %1121 = vmatprep.subr.mxu0 0.0
    %1122 = vmatpush1.xpose.msra.mxu0 0.0
    %1123 = vmatprep.subr.mxu0 0.0
    %1124 = vmatpush1.xpose.msra.mxu0 0.0
    %1125 = vmatprep.subr.mxu0 0.0
    %1126 = vmatpush1.xpose.msra.mxu0 0.0
    %1127 = vmatprep.subr.mxu0 0.0
    %1128 = vmatpush1.xpose.msra.mxu0 0.0
    %1129 = vmatprep.subr.mxu0 0.0
    %1130 = vmatpush1.xpose.msra.mxu0 0.0
    %1131 = vmatprep.subr.mxu0 0.0
    %1132 = vmatpush1.xpose.msra.mxu0 0.0
    %1133 = vmatprep.subr.mxu0 0.0
    %1134 = vmatpush1.xpose.msra.mxu0 0.0
    %1135 = vmatprep.subr.mxu0 0.0
    %1136 = vmatpush1.xpose.msra.mxu0 0.0
    %1137 = vmatprep.subr.mxu0 0.0
    %1138 = vmatpush1.xpose.msra.mxu0 0.0
    %1139 = vmatprep.subr.mxu0 0.0
    %1140 = vmatpush1.xpose.msra.mxu0 0.0
    %1141 = vmatprep.subr.mxu0 0.0
    %1142 = vmatpush1.xpose.msra.mxu0 0.0
    %1143 = vmatprep.subr.mxu0 0.0
    %1144 = vmatpush1.xpose.msra.mxu0 0.0
    %1145 = vmatprep.subr.mxu0 0.0
    %1146 = vmatpush1.xpose.msra.mxu0 0.0
    %1147 = vmatprep.subr.mxu0 0.0
    %1148 = vmatpush1.xpose.msra.mxu0 0.0
    %1149 = vmatprep.subr.mxu0 0.0
    %1150 = vmatpush1.xpose.msra.mxu0 0.0
    %1151 = vmatprep.subr.mxu0 0.0
    %1152 = vmatpush1.xpose.msra.mxu0 0.0
    %1153 = vmatprep.subr.mxu0 0.0
    %1154 = vmatpush1.xpose.msra.mxu0 0.0
    %1155 = vmatprep.subr.mxu0 0.0
    %1156 = vmatpush1.xpose.msra.mxu0 0.0
    %1157 = vmatprep.subr.mxu0 0.0
    %1158 = vmatpush1.xpose.msra.mxu0 0.0
    %1159 = vmatprep.subr.mxu0 0.0
    %1160 = vmatpush1.xpose.msra.mxu0 0.0
    %1161 = vmatprep.subr.mxu0 0.0
    %1162 = vmatpush1.xpose.msra.mxu0 0.0
    %1163 = vmatprep.subr.mxu0 0.0
    %1164 = vmatpush1.xpose.msra.mxu0 0.0
    %1165 = vmatprep.subr.mxu0 0.0
    %1166 = vmatpush1.xpose.msra.mxu0 0.0
    %1167 = vmatprep.subr.mxu0 0.0
    %1168 = vmatpush1.xpose.msra.mxu0 0.0
    %1169 = vmatprep.subr.mxu0 0.0
    %1170 = vmatpush1.xpose.msra.mxu0 0.0
    %1171 = vmatprep.subr.mxu0 0.0
    %1172 = vmatpush1.xpose.msra.mxu0 0.0
    %1173 = vmatprep.subr.mxu0 0.0
    %1174 = vmatpush1.xpose.msra.mxu0 0.0
    %1175 = vmatprep.subr.mxu0 0.0
    %1176 = vmatpush1.xpose.msra.mxu0 0.0
    %1177 = vmatprep.subr.mxu0 0.0
    %1178 = vmatpush1.xpose.msra.mxu0 0.0
    %1179 = vmatprep.mubr.f32.mxu0 0.0
    %1180 = vmatmul.mubr.f32.gmra.mrb[0].mxu0 %v1111
    %v1181 = vpop.f32.mrb[0].mxu0
    %v1182 = vadd.f32 0.0, %v1181
    %v1183 = vpop.f32.mrb[0].mxu0
    %1184 = vdwg.mxu0
    %v1185 = vmul.f32 %v1182, 0.35355338
    %v1186 = vsel %vm264, %v1185, -inf
    %1187 = vmax.xlane.f32.xlu0 %v1186
    %v1188 = vpop.xlane.xlu0 %1187
    %v1189 = vsub.f32 %v1185, %v1188
    %v1190 = vmul.f32 %v1189, 1.442695
    %v1191 = vpow.pop %v1190
    %v1192 = vsel %vm264, %v1191, 0.0
    %1193 = vadd.xlane.f32.xlu0 %v1192
    %v1194 = vpop.xlane.xlu0 %1193
    %v1195 = vrcp.pop %v1194
    %v1196 = vmul.f32 %v1191, %v1195
    %1197 = vrot.lane.b32.xlu0 %v258, 56
    %v1198 = vpop.permute.xlu0 %1197
    %v1201 = vsel %vm264, %v1196, 0
    %1203 = vmatprep.subr.mxu0 0.0
    %1204 = vmatpush1.msra.mxu0 %v1198
    %1205 = vmatprep.subr.mxu0 0.0
    %1206 = vmatpush1.msra.mxu0 0.0
    %1207 = vmatprep.subr.mxu0 0.0
    %1208 = vmatpush1.msra.mxu0 0.0
    %1209 = vmatprep.subr.mxu0 0.0
    %1210 = vmatpush1.msra.mxu0 0.0
    %1211 = vmatprep.subr.mxu0 0.0
    %1212 = vmatpush1.msra.mxu0 0.0
    %1213 = vmatprep.subr.mxu0 0.0
    %1214 = vmatpush1.msra.mxu0 0.0
    %1215 = vmatprep.subr.mxu0 0.0
    %1216 = vmatpush1.msra.mxu0 0.0
    %1217 = vmatprep.subr.mxu0 0.0
    %1218 = vmatpush1.msra.mxu0 0.0
    %1219 = vmatprep.subr.mxu0 0.0
    %1220 = vmatpush1.msra.mxu0 0.0
    %1221 = vmatprep.subr.mxu0 0.0
    %1222 = vmatpush1.msra.mxu0 0.0
    %1223 = vmatprep.subr.mxu0 0.0
    %1224 = vmatpush1.msra.mxu0 0.0
    %1225 = vmatprep.subr.mxu0 0.0
    %1226 = vmatpush1.msra.mxu0 0.0
    %1227 = vmatprep.subr.mxu0 0.0
    %1228 = vmatpush1.msra.mxu0 0.0
    %1229 = vmatprep.subr.mxu0 0.0
    %1230 = vmatpush1.msra.mxu0 0.0
    %1231 = vmatprep.subr.mxu0 0.0
    %1232 = vmatpush1.msra.mxu0 0.0
    %1233 = vmatprep.subr.mxu0 0.0
    %1234 = vmatpush1.msra.mxu0 0.0
    %1235 = vmatprep.subr.mxu0 0.0
    %1236 = vmatpush1.msra.mxu0 0.0
    %1237 = vmatprep.subr.mxu0 0.0
    %1238 = vmatpush1.msra.mxu0 0.0
    %1239 = vmatprep.subr.mxu0 0.0
    %1240 = vmatpush1.msra.mxu0 0.0
    %1241 = vmatprep.subr.mxu0 0.0
    %1242 = vmatpush1.msra.mxu0 0.0
    %1243 = vmatprep.subr.mxu0 0.0
    %1244 = vmatpush1.msra.mxu0 0.0
    %1245 = vmatprep.subr.mxu0 0.0
    %1246 = vmatpush1.msra.mxu0 0.0
    %1247 = vmatprep.subr.mxu0 0.0
    %1248 = vmatpush1.msra.mxu0 0.0
    %1249 = vmatprep.subr.mxu0 0.0
    %1250 = vmatpush1.msra.mxu0 0.0
    %1251 = vmatprep.subr.mxu0 0.0
    %1252 = vmatpush1.msra.mxu0 0.0
    %1253 = vmatprep.subr.mxu0 0.0
    %1254 = vmatpush1.msra.mxu0 0.0
    %1255 = vmatprep.subr.mxu0 0.0
    %1256 = vmatpush1.msra.mxu0 0.0
    %1257 = vmatprep.subr.mxu0 0.0
    %1258 = vmatpush1.msra.mxu0 0.0
    %1259 = vmatprep.subr.mxu0 0.0
    %1260 = vmatpush1.msra.mxu0 0.0
    %1261 = vmatprep.subr.mxu0 0.0
    %1262 = vmatpush1.msra.mxu0 0.0
    %1263 = vmatprep.subr.mxu0 0.0
    %1264 = vmatpush1.msra.mxu0 0.0
    %1265 = vmatprep.subr.mxu0 0.0
    %1266 = vmatpush1.msra.mxu0 0.0
    %1267 = vmatprep.mubr.f32.mxu0 0.0
    %1268 = vmatmul.mubr.f32.gmra.mrb[0].mxu0 %v1201
    %v1269 = vpop.f32.mrb[0].mxu0
    %v1270 = vadd.f32 0.0, %v1269
    %v1271 = vpop.f32.mrb[0].mxu0
    %1272 = vdwg.mxu0
    %1273 = vrot.lane.b32.xlu0 %v258, 112
    %v1274 = vpop.permute.xlu0 %1273
    %1275 = vrot.lane.b32.xlu0 %v258, 80
    %v1276 = vpop.permute.xlu0 %1275
    %v1277 = vsel %vm264, %v1274, 0
    %v1279 = vsel %vm264, %v1276, 0
    %1281 = vmatprep.subr.mxu0 0.0
    %1282 = vmatpush1.xpose.msra.mxu0 %v1279
    %1283 = vmatprep.subr.mxu0 0.0
    %1284 = vmatpush1.xpose.msra.mxu0 0.0
    %1285 = vmatprep.subr.mxu0 0.0
    %1286 = vmatpush1.xpose.msra.mxu0 0.0
    %1287 = vmatprep.subr.mxu0 0.0
    %1288 = vmatpush1.xpose.msra.mxu0 0.0
    %1289 = vmatprep.subr.mxu0 0.0
    %1290 = vmatpush1.xpose.msra.mxu0 0.0
    %1291 = vmatprep.subr.mxu0 0.0
    %1292 = vmatpush1.xpose.msra.mxu0 0.0
    %1293 = vmatprep.subr.mxu0 0.0
    %1294 = vmatpush1.xpose.msra.mxu0 0.0
    %1295 = vmatprep.subr.mxu0 0.0
    %1296 = vmatpush1.xpose.msra.mxu0 0.0
    %1297 = vmatprep.subr.mxu0 0.0
    %1298 = vmatpush1.xpose.msra.mxu0 0.0
    %1299 = vmatprep.subr.mxu0 0.0
    %1300 = vmatpush1.xpose.msra.mxu0 0.0
    %1301 = vmatprep.subr.mxu0 0.0
    %1302 = vmatpush1.xpose.msra.mxu0 0.0
    %1303 = vmatprep.subr.mxu0 0.0
    %1304 = vmatpush1.xpose.msra.mxu0 0.0
    %1305 = vmatprep.subr.mxu0 0.0
    %1306 = vmatpush1.xpose.msra.mxu0 0.0
    %1307 = vmatprep.subr.mxu0 0.0
    %1308 = vmatpush1.xpose.msra.mxu0 0.0
    %1309 = vmatprep.subr.mxu0 0.0
    %1310 = vmatpush1.xpose.msra.mxu0 0.0
    %1311 = vmatprep.subr.mxu0 0.0
    %1312 = vmatpush1.xpose.msra.mxu0 0.0
    %1313 = vmatprep.subr.mxu0 0.0
    %1314 = vmatpush1.xpose.msra.mxu0 0.0
    %1315 = vmatprep.subr.mxu0 0.0
    %1316 = vmatpush1.xpose.msra.mxu0 0.0
    %1317 = vmatprep.subr.mxu0 0.0
    %1318 = vmatpush1.xpose.msra.mxu0 0.0
    %1319 = vmatprep.subr.mxu0 0.0
    %1320 = vmatpush1.xpose.msra.mxu0 0.0
    %1321 = vmatprep.subr.mxu0 0.0
    %1322 = vmatpush1.xpose.msra.mxu0 0.0
    %1323 = vmatprep.subr.mxu0 0.0
    %1324 = vmatpush1.xpose.msra.mxu0 0.0
    %1325 = vmatprep.subr.mxu0 0.0
    %1326 = vmatpush1.xpose.msra.mxu0 0.0
    %1327 = vmatprep.subr.mxu0 0.0
    %1328 = vmatpush1.xpose.msra.mxu0 0.0
    %1329 = vmatprep.subr.mxu0 0.0
    %1330 = vmatpush1.xpose.msra.mxu0 0.0
    %1331 = vmatprep.subr.mxu0 0.0
    %1332 = vmatpush1.xpose.msra.mxu0 0.0
    %1333 = vmatprep.subr.mxu0 0.0
    %1334 = vmatpush1.xpose.msra.mxu0 0.0
    %1335 = vmatprep.subr.mxu0 0.0
    %1336 = vmatpush1.xpose.msra.mxu0 0.0
    %1337 = vmatprep.subr.mxu0 0.0
    %1338 = vmatpush1.xpose.msra.mxu0 0.0
    %1339 = vmatprep.subr.mxu0 0.0
    %1340 = vmatpush1.xpose.msra.mxu0 0.0
    %1341 = vmatprep.subr.mxu0 0.0
    %1342 = vmatpush1.xpose.msra.mxu0 0.0
    %1343 = vmatprep.subr.mxu0 0.0
    %1344 = vmatpush1.xpose.msra.mxu0 0.0
    %1345 = vmatprep.mubr.f32.mxu0 0.0
    %1346 = vmatmul.mubr.f32.gmra.mrb[0].mxu0 %v1277
    %v1347 = vpop.f32.mrb[0].mxu0
    %v1348 = vadd.f32 0.0, %v1347
    %v1349 = vpop.f32.mrb[0].mxu0
    %1350 = vdwg.mxu0
    %v1351 = vmul.f32 %v1348, 0.35355338
    %v1352 = vsel %vm264, %v1351, -inf
    %1353 = vmax.xlane.f32.xlu0 %v1352
    %v1354 = vpop.xlane.xlu0 %1353
    %v1355 = vsub.f32 %v1351, %v1354
    %v1356 = vmul.f32 %v1355, 1.442695
    %v1357 = vpow.pop %v1356
    %v1358 = vsel %vm264, %v1357, 0.0
    %1359 = vadd.xlane.f32.xlu0 %v1358
    %v1360 = vpop.xlane.xlu0 %1359
    %v1361 = vrcp.pop %v1360
    %v1362 = vmul.f32 %v1357, %v1361
    %1363 = vrot.lane.b32.xlu0 %v258, 48
    %v1364 = vpop.permute.xlu0 %1363
    %v1367 = vsel %vm264, %v1362, 0
    %1369 = vmatprep.subr.mxu0 0.0
    %1370 = vmatpush1.msra.mxu0 %v1364
    %1371 = vmatprep.subr.mxu0 0.0
    %1372 = vmatpush1.msra.mxu0 0.0
    %1373 = vmatprep.subr.mxu0 0.0
    %1374 = vmatpush1.msra.mxu0 0.0
    %1375 = vmatprep.subr.mxu0 0.0
    %1376 = vmatpush1.msra.mxu0 0.0
    %1377 = vmatprep.subr.mxu0 0.0
    %1378 = vmatpush1.msra.mxu0 0.0
    %1379 = vmatprep.subr.mxu0 0.0
    %1380 = vmatpush1.msra.mxu0 0.0
    %1381 = vmatprep.subr.mxu0 0.0
    %1382 = vmatpush1.msra.mxu0 0.0
    %1383 = vmatprep.subr.mxu0 0.0
    %1384 = vmatpush1.msra.mxu0 0.0
    %1385 = vmatprep.subr.mxu0 0.0
    %1386 = vmatpush1.msra.mxu0 0.0
    %1387 = vmatprep.subr.mxu0 0.0
    %1388 = vmatpush1.msra.mxu0 0.0
    %1389 = vmatprep.subr.mxu0 0.0
    %1390 = vmatpush1.msra.mxu0 0.0
    %1391 = vmatprep.subr.mxu0 0.0
    %1392 = vmatpush1.msra.mxu0 0.0
    %1393 = vmatprep.subr.mxu0 0.0
    %1394 = vmatpush1.msra.mxu0 0.0
    %1395 = vmatprep.subr.mxu0 0.0
    %1396 = vmatpush1.msra.mxu0 0.0
    %1397 = vmatprep.subr.mxu0 0.0
    %1398 = vmatpush1.msra.mxu0 0.0
    %1399 = vmatprep.subr.mxu0 0.0
    %1400 = vmatpush1.msra.mxu0 0.0
    %1401 = vmatprep.subr.mxu0 0.0
    %1402 = vmatpush1.msra.mxu0 0.0
    %1403 = vmatprep.subr.mxu0 0.0
    %1404 = vmatpush1.msra.mxu0 0.0
    %1405 = vmatprep.subr.mxu0 0.0
    %1406 = vmatpush1.msra.mxu0 0.0
    %1407 = vmatprep.subr.mxu0 0.0
    %1408 = vmatpush1.msra.mxu0 0.0
    %1409 = vmatprep.subr.mxu0 0.0
    %1410 = vmatpush1.msra.mxu0 0.0
    %1411 = vmatprep.subr.mxu0 0.0
    %1412 = vmatpush1.msra.mxu0 0.0
    %1413 = vmatprep.subr.mxu0 0.0
    %1414 = vmatpush1.msra.mxu0 0.0
    %1415 = vmatprep.subr.mxu0 0.0
    %1416 = vmatpush1.msra.mxu0 0.0
    %1417 = vmatprep.subr.mxu0 0.0
    %1418 = vmatpush1.msra.mxu0 0.0
    %1419 = vmatprep.subr.mxu0 0.0
    %1420 = vmatpush1.msra.mxu0 0.0
    %1421 = vmatprep.subr.mxu0 0.0
    %1422 = vmatpush1.msra.mxu0 0.0
    %1423 = vmatprep.subr.mxu0 0.0
    %1424 = vmatpush1.msra.mxu0 0.0
    %1425 = vmatprep.subr.mxu0 0.0
    %1426 = vmatpush1.msra.mxu0 0.0
    %1427 = vmatprep.subr.mxu0 0.0
    %1428 = vmatpush1.msra.mxu0 0.0
    %1429 = vmatprep.subr.mxu0 0.0
    %1430 = vmatpush1.msra.mxu0 0.0
    %1431 = vmatprep.subr.mxu0 0.0
    %1432 = vmatpush1.msra.mxu0 0.0
    %1433 = vmatprep.mubr.f32.mxu0 0.0
    %1434 = vmatmul.mubr.f32.gmra.mrb[0].mxu0 %v1367
    %v1435 = vpop.f32.mrb[0].mxu0
    %v1436 = vadd.f32 0.0, %v1435
    %v1437 = vpop.f32.mrb[0].mxu0
    %1438 = vdwg.mxu0
    %1439 = vrot.lane.b32.xlu0 %v258, 104
    %v1440 = vpop.permute.xlu0 %1439
    %1441 = vrot.lane.b32.xlu0 %v258, 72
    %v1442 = vpop.permute.xlu0 %1441
    %v1443 = vsel %vm264, %v1440, 0
    %v1445 = vsel %vm264, %v1442, 0
    %1447 = vmatprep.subr.mxu0 0.0
    %1448 = vmatpush1.xpose.msra.mxu0 %v1445
    %1449 = vmatprep.subr.mxu0 0.0
    %1450 = vmatpush1.xpose.msra.mxu0 0.0
    %1451 = vmatprep.subr.mxu0 0.0
    %1452 = vmatpush1.xpose.msra.mxu0 0.0
    %1453 = vmatprep.subr.mxu0 0.0
    %1454 = vmatpush1.xpose.msra.mxu0 0.0
    %1455 = vmatprep.subr.mxu0 0.0
    %1456 = vmatpush1.xpose.msra.mxu0 0.0
    %1457 = vmatprep.subr.mxu0 0.0
    %1458 = vmatpush1.xpose.msra.mxu0 0.0
    %1459 = vmatprep.subr.mxu0 0.0
    %1460 = vmatpush1.xpose.msra.mxu0 0.0
    %1461 = vmatprep.subr.mxu0 0.0
    %1462 = vmatpush1.xpose.msra.mxu0 0.0
    %1463 = vmatprep.subr.mxu0 0.0
    %1464 = vmatpush1.xpose.msra.mxu0 0.0
    %1465 = vmatprep.subr.mxu0 0.0
    %1466 = vmatpush1.xpose.msra.mxu0 0.0
    %1467 = vmatprep.subr.mxu0 0.0
    %1468 = vmatpush1.xpose.msra.mxu0 0.0
    %1469 = vmatprep.subr.mxu0 0.0
    %1470 = vmatpush1.xpose.msra.mxu0 0.0
    %1471 = vmatprep.subr.mxu0 0.0
    %1472 = vmatpush1.xpose.msra.mxu0 0.0
    %1473 = vmatprep.subr.mxu0 0.0
    %1474 = vmatpush1.xpose.msra.mxu0 0.0
    %1475 = vmatprep.subr.mxu0 0.0
    %1476 = vmatpush1.xpose.msra.mxu0 0.0
    %1477 = vmatprep.subr.mxu0 0.0
    %1478 = vmatpush1.xpose.msra.mxu0 0.0
    %1479 = vmatprep.subr.mxu0 0.0
    %1480 = vmatpush1.xpose.msra.mxu0 0.0
    %1481 = vmatprep.subr.mxu0 0.0
    %1482 = vmatpush1.xpose.msra.mxu0 0.0
    %1483 = vmatprep.subr.mxu0 0.0
    %1484 = vmatpush1.xpose.msra.mxu0 0.0
    %1485 = vmatprep.subr.mxu0 0.0
    %1486 = vmatpush1.xpose.msra.mxu0 0.0
    %1487 = vmatprep.subr.mxu0 0.0
    %1488 = vmatpush1.xpose.msra.mxu0 0.0
    %1489 = vmatprep.subr.mxu0 0.0
    %1490 = vmatpush1.xpose.msra.mxu0 0.0
    %1491 = vmatprep.subr.mxu0 0.0
    %1492 = vmatpush1.xpose.msra.mxu0 0.0
    %1493 = vmatprep.subr.mxu0 0.0
    %1494 = vmatpush1.xpose.msra.mxu0 0.0
    %1495 = vmatprep.subr.mxu0 0.0
    %1496 = vmatpush1.xpose.msra.mxu0 0.0
    %1497 = vmatprep.subr.mxu0 0.0
    %1498 = vmatpush1.xpose.msra.mxu0 0.0
    %1499 = vmatprep.subr.mxu0 0.0
    %1500 = vmatpush1.xpose.msra.mxu0 0.0
    %1501 = vmatprep.subr.mxu0 0.0
    %1502 = vmatpush1.xpose.msra.mxu0 0.0
    %1503 = vmatprep.subr.mxu0 0.0
    %1504 = vmatpush1.xpose.msra.mxu0 0.0
    %1505 = vmatprep.subr.mxu0 0.0
    %1506 = vmatpush1.xpose.msra.mxu0 0.0
    %1507 = vmatprep.subr.mxu0 0.0
    %1508 = vmatpush1.xpose.msra.mxu0 0.0
    %1509 = vmatprep.subr.mxu0 0.0
    %1510 = vmatpush1.xpose.msra.mxu0 0.0
    %1511 = vmatprep.mubr.f32.mxu0 0.0
    %1512 = vmatmul.mubr.f32.gmra.mrb[0].mxu0 %v1443
    %v1513 = vpop.f32.mrb[0].mxu0
    %v1514 = vadd.f32 0.0, %v1513
    %v1515 = vpop.f32.mrb[0].mxu0
    %1516 = vdwg.mxu0
    %v1517 = vmul.f32 %v1514, 0.35355338
    %v1518 = vsel %vm264, %v1517, -inf
    %1519 = vmax.xlane.f32.xlu0 %v1518
    %v1520 = vpop.xlane.xlu0 %1519
    %v1521 = vsub.f32 %v1517, %v1520
    %v1522 = vmul.f32 %v1521, 1.442695
    %v1523 = vpow.pop %v1522
    %v1524 = vsel %vm264, %v1523, 0.0
    %1525 = vadd.xlane.f32.xlu0 %v1524
    %v1526 = vpop.xlane.xlu0 %1525
    %v1527 = vrcp.pop %v1526
    %v1528 = vmul.f32 %v1523, %v1527
    %1529 = vrot.lane.b32.xlu0 %v258, 40
    %v1530 = vpop.permute.xlu0 %1529
    %v1533 = vsel %vm264, %v1528, 0
    %1535 = vmatprep.subr.mxu0 0.0
    %1536 = vmatpush1.msra.mxu0 %v1530
    %1537 = vmatprep.subr.mxu0 0.0
    %1538 = vmatpush1.msra.mxu0 0.0
    %1539 = vmatprep.subr.mxu0 0.0
    %1540 = vmatpush1.msra.mxu0 0.0
    %1541 = vmatprep.subr.mxu0 0.0
    %1542 = vmatpush1.msra.mxu0 0.0
    %1543 = vmatprep.subr.mxu0 0.0
    %1544 = vmatpush1.msra.mxu0 0.0
    %1545 = vmatprep.subr.mxu0 0.0
    %1546 = vmatpush1.msra.mxu0 0.0
    %1547 = vmatprep.subr.mxu0 0.0
    %1548 = vmatpush1.msra.mxu0 0.0
    %1549 = vmatprep.subr.mxu0 0.0
    %1550 = vmatpush1.msra.mxu0 0.0
    %1551 = vmatprep.subr.mxu0 0.0
    %1552 = vmatpush1.msra.mxu0 0.0
    %1553 = vmatprep.subr.mxu0 0.0
    %1554 = vmatpush1.msra.mxu0 0.0
    %1555 = vmatprep.subr.mxu0 0.0
    %1556 = vmatpush1.msra.mxu0 0.0
    %1557 = vmatprep.subr.mxu0 0.0
    %1558 = vmatpush1.msra.mxu0 0.0
    %1559 = vmatprep.subr.mxu0 0.0
    %1560 = vmatpush1.msra.mxu0 0.0
    %1561 = vmatprep.subr.mxu0 0.0
    %1562 = vmatpush1.msra.mxu0 0.0
    %1563 = vmatprep.subr.mxu0 0.0
    %1564 = vmatpush1.msra.mxu0 0.0
    %1565 = vmatprep.subr.mxu0 0.0
    %1566 = vmatpush1.msra.mxu0 0.0
    %1567 = vmatprep.subr.mxu0 0.0
    %1568 = vmatpush1.msra.mxu0 0.0
    %1569 = vmatprep.subr.mxu0 0.0
    %1570 = vmatpush1.msra.mxu0 0.0
    %1571 = vmatprep.subr.mxu0 0.0
    %1572 = vmatpush1.msra.mxu0 0.0
    %1573 = vmatprep.subr.mxu0 0.0
    %1574 = vmatpush1.msra.mxu0 0.0
    %1575 = vmatprep.subr.mxu0 0.0
    %1576 = vmatpush1.msra.mxu0 0.0
    %1577 = vmatprep.subr.mxu0 0.0
    %1578 = vmatpush1.msra.mxu0 0.0
    %1579 = vmatprep.subr.mxu0 0.0
    %1580 = vmatpush1.msra.mxu0 0.0
    %1581 = vmatprep.subr.mxu0 0.0
    %1582 = vmatpush1.msra.mxu0 0.0
    %1583 = vmatprep.subr.mxu0 0.0
    %1584 = vmatpush1.msra.mxu0 0.0
    %1585 = vmatprep.subr.mxu0 0.0
    %1586 = vmatpush1.msra.mxu0 0.0
    %1587 = vmatprep.subr.mxu0 0.0
    %1588 = vmatpush1.msra.mxu0 0.0
    %1589 = vmatprep.subr.mxu0 0.0
    %1590 = vmatpush1.msra.mxu0 0.0
    %1591 = vmatprep.subr.mxu0 0.0
    %1592 = vmatpush1.msra.mxu0 0.0
    %1593 = vmatprep.subr.mxu0 0.0
    %1594 = vmatpush1.msra.mxu0 0.0
    %1595 = vmatprep.subr.mxu0 0.0
    %1596 = vmatpush1.msra.mxu0 0.0
    %1597 = vmatprep.subr.mxu0 0.0
    %1598 = vmatpush1.msra.mxu0 0.0
    %1599 = vmatprep.mubr.f32.mxu0 0.0
    %1600 = vmatmul.mubr.f32.gmra.mrb[0].mxu0 %v1533
    %v1601 = vpop.f32.mrb[0].mxu0
    %v1602 = vadd.f32 0.0, %v1601
    %v1603 = vpop.f32.mrb[0].mxu0
    %1604 = vdwg.mxu0
    %1606 = vrot.lane.b32.xlu0 %v1270, 8
    %v1607 = vpop.permute.xlu0 %1606
    %1610 = vrot.lane.b32.xlu0 %v1436, 16
    %v1611 = vpop.permute.xlu0 %1610
    %1614 = vrot.lane.b32.xlu0 %v1602, 24
    %v1615 = vpop.permute.xlu0 %1614
    %v1617 = vsel %vm264, %v1104, %v1607
    %v1618 = vsel %vm938, %v1617, %v1611
    %v1619 = vsel %vm940, %v1618, %v1615
    %v1620 = vld [vmem:[#allocation5] sm:$0xff]
    %v1621 = vld [vmem:[#allocation5 + $0x8] sm:$0xff]
    %v1622 = vld [vmem:[#allocation5 + $0x10] sm:$0xff]
    %v1623 = vld [vmem:[#allocation5 + $0x18] sm:$0xff]
    %v1624 = vld [vmem:[%s6] sm:$0x1]
    %v1626 = vlaneseq
    %v1627 = vshrl.u32 %v1626, 7
    %v1628 = vsub.s32 0, %v1627
    %v1629 = vrot.slane %v1624, %v1628
    %v1632 = vsel %vm125, %v941, 0
    %v1635 = vsel %vm125, %v1619, 0
    %1637 = vmatprep.subr.mxu0 0.0
    %1638 = vmatpush1.msra.mxu0 %v1620
    %1639 = vmatprep.subr.mxu0 0.0
    %1640 = vmatpush1.msra.mxu0 %v1621
    %1641 = vmatprep.subr.mxu0 0.0
    %1642 = vmatpush1.msra.mxu0 %v1622
    %1643 = vmatprep.subr.mxu0 0.0
    %1644 = vmatpush1.msra.mxu0 %v1623
    %1645 = vmatprep.subr.mxu0 0.0
    %1646 = vmatpush1.msra.mxu0 0.0
    %1647 = vmatprep.subr.mxu0 0.0
    %1648 = vmatpush1.msra.mxu0 0.0
    %1649 = vmatprep.subr.mxu0 0.0
    %1650 = vmatpush1.msra.mxu0 0.0
    %1651 = vmatprep.subr.mxu0 0.0
    %1652 = vmatpush1.msra.mxu0 0.0
    %1653 = vmatprep.subr.mxu0 0.0
    %1654 = vmatpush1.msra.mxu0 0.0
    %1655 = vmatprep.subr.mxu0 0.0
    %1656 = vmatpush1.msra.mxu0 0.0
    %1657 = vmatprep.subr.mxu0 0.0
    %1658 = vmatpush1.msra.mxu0 0.0
    %1659 = vmatprep.subr.mxu0 0.0
    %1660 = vmatpush1.msra.mxu0 0.0
    %1661 = vmatprep.subr.mxu0 0.0
    %1662 = vmatpush1.msra.mxu0 0.0
    %1663 = vmatprep.subr.mxu0 0.0
    %1664 = vmatpush1.msra.mxu0 0.0
    %1665 = vmatprep.subr.mxu0 0.0
    %1666 = vmatpush1.msra.mxu0 0.0
    %1667 = vmatprep.subr.mxu0 0.0
    %1668 = vmatpush1.msra.mxu0 0.0
    %1669 = vmatprep.subr.mxu0 0.0
    %1670 = vmatpush1.msra.mxu0 0.0
    %1671 = vmatprep.subr.mxu0 0.0
    %1672 = vmatpush1.msra.mxu0 0.0
    %1673 = vmatprep.subr.mxu0 0.0
    %1674 = vmatpush1.msra.mxu0 0.0
    %1675 = vmatprep.subr.mxu0 0.0
    %1676 = vmatpush1.msra.mxu0 0.0
    %1677 = vmatprep.subr.mxu0 0.0
    %1678 = vmatpush1.msra.mxu0 0.0
    %1679 = vmatprep.subr.mxu0 0.0
    %1680 = vmatpush1.msra.mxu0 0.0
    %1681 = vmatprep.subr.mxu0 0.0
    %1682 = vmatpush1.msra.mxu0 0.0
    %1683 = vmatprep.subr.mxu0 0.0
    %1684 = vmatpush1.msra.mxu0 0.0
    %1685 = vmatprep.subr.mxu0 0.0
    %1686 = vmatpush1.msra.mxu0 0.0
    %1687 = vmatprep.subr.mxu0 0.0
    %1688 = vmatpush1.msra.mxu0 0.0
    %1689 = vmatprep.subr.mxu0 0.0
    %1690 = vmatpush1.msra.mxu0 0.0
    %1691 = vmatprep.subr.mxu0 0.0
    %1692 = vmatpush1.msra.mxu0 0.0
    %1693 = vmatprep.subr.mxu0 0.0
    %1694 = vmatpush1.msra.mxu0 0.0
    %1695 = vmatprep.subr.mxu0 0.0
    %1696 = vmatpush1.msra.mxu0 0.0
    %1697 = vmatprep.subr.mxu0 0.0
    %1698 = vmatpush1.msra.mxu0 0.0
    %1699 = vmatprep.subr.mxu0 0.0
    %1700 = vmatpush1.msra.mxu0 0.0
    %1701 = vmatprep.mubr.f32.mxu0 0.0
    %1702 = vmatmul.mubr.f32.gmra.mrb[0].mxu0 %v1632
    %v1703 = vpop.f32.mrb[0].mxu0
    %v1704 = vadd.f32 %v1629, %v1703
    %v1705 = vpop.f32.mrb[0].mxu0
    %1706 = vmatprep.mubr.f32.mxu0 0.0
    %1707 = vmatmul.mubr.f32.gmra.mrb[0].mxu0 %v1635
    %v1708 = vpop.f32.mrb[0].mxu0
    %v1709 = vadd.f32 %v1629, %v1708
    %v1710 = vpop.f32.mrb[0].mxu0
    %1711 = vdwg.mxu0
    %v1712 = vadd.f32 %v167, %v1704
    %v1713 = vadd.f32 %v168, %v1709
    %v1714 = vld [vmem:[%s7] sm:$0x1]
    %v1715 = vld [vmem:[%s8] sm:$0x1]
    %v1716 = vsel %vm125, %v1712, 0.0
    %1717 = vadd.xlane.f32.xlu0 %v1716
    %v1718 = vpop.xlane.xlu0 %1717
    %v1719 = vsel %vm125, %v1713, 0.0
    %1720 = vadd.xlane.f32.xlu0 %v1719
    %v1721 = vpop.xlane.xlu0 %1720
    %v1722 = vmul.f32 %v1718, %v132
    %v1723 = vmul.f32 %v1721, %v132
    %v1724 = vsub.f32 %v1712, %v1722
    %v1725 = vsub.f32 %v1713, %v1723
    %v1726 = vmul.f32 %v1724, %v1724
    %v1727 = vmul.f32 %v1725, %v1725
    %v1728 = vsel %vm125, %v1726, 0.0
    %1729 = vadd.xlane.f32.xlu0 %v1728
    %v1730 = vpop.xlane.xlu0 %1729
    %v1731 = vsel %vm125, %v1727, 0.0
    %1732 = vadd.xlane.f32.xlu0 %v1731
    %v1733 = vpop.xlane.xlu0 %1732
    %v1734 = vmul.f32 %v1730, %v132
    %v1735 = vmul.f32 %v1733, %v132
    %v1736 = vadd.f32 %v1734, 1e-12
    %v1737 = vadd.f32 %v1735, 1e-12
    %v1738 = vrsqrt.pop %v1736
    %v1739 = vrsqrt.pop %v1737
    %v1740 = vmul.f32 %v1724, %v1738
    %v1741 = vmul.f32 %v1725, %v1739
    %v1743 = vlaneseq
    %v1744 = vshrl.u32 %v1743, 7
    %v1745 = vsub.s32 0, %v1744
    %v1746 = vrot.slane %v1714, %v1745
    %v1748 = vmul.f32 %v1740, %v1746
    %v1749 = vmul.f32 %v1741, %v1746
    %v1751 = vlaneseq
    %v1752 = vshrl.u32 %v1751, 7
    %v1753 = vsub.s32 0, %v1752
    %v1754 = vrot.slane %v1715, %v1753
    %v1756 = vadd.f32 %v1748, %v1754
    %v1757 = vadd.f32 %v1749, %v1754
    %v1758 = vld [vmem:[#allocation7] sm:$0xff]
    %v1759 = vld [vmem:[#allocation7 + $0x8] sm:$0xff]
    %v1760 = vld [vmem:[#allocation7 + $0x10] sm:$0xff]
    %v1761 = vld [vmem:[#allocation7 + $0x18] sm:$0xff]
    %v1762 = vld [vmem:[%s10] sm:$0x1]
    %v1764 = vlaneseq
    %v1765 = vshrl.u32 %v1764, 7
    %v1766 = vsub.s32 0, %v1765
    %v1767 = vrot.slane %v1762, %v1766
    %v1770 = vsel %vm125, %v1756, 0
    %v1773 = vsel %vm125, %v1757, 0
    %1775 = vmatprep.subr.mxu0 0.0
    %1776 = vmatpush1.msra.mxu0 %v1758
    %1777 = vmatprep.subr.mxu0 0.0
    %1778 = vmatpush1.msra.mxu0 %v1759
    %1779 = vmatprep.subr.mxu0 0.0
    %1780 = vmatpush1.msra.mxu0 %v1760
    %1781 = vmatprep.subr.mxu0 0.0
    %1782 = vmatpush1.msra.mxu0 %v1761
    %1783 = vmatprep.subr.mxu0 0.0
    %1784 = vmatpush1.msra.mxu0 0.0
    %1785 = vmatprep.subr.mxu0 0.0
    %1786 = vmatpush1.msra.mxu0 0.0
    %1787 = vmatprep.subr.mxu0 0.0
    %1788 = vmatpush1.msra.mxu0 0.0
    %1789 = vmatprep.subr.mxu0 0.0
    %1790 = vmatpush1.msra.mxu0 0.0
    %1791 = vmatprep.subr.mxu0 0.0
    %1792 = vmatpush1.msra.mxu0 0.0
    %1793 = vmatprep.subr.mxu0 0.0
    %1794 = vmatpush1.msra.mxu0 0.0
    %1795 = vmatprep.subr.mxu0 0.0
    %1796 = vmatpush1.msra.mxu0 0.0
    %1797 = vmatprep.subr.mxu0 0.0
    %1798 = vmatpush1.msra.mxu0 0.0
    %1799 = vmatprep.subr.mxu0 0.0
    %1800 = vmatpush1.msra.mxu0 0.0
    %1801 = vmatprep.subr.mxu0 0.0
    %1802 = vmatpush1.msra.mxu0 0.0
    %1803 = vmatprep.subr.mxu0 0.0
    %1804 = vmatpush1.msra.mxu0 0.0
    %1805 = vmatprep.subr.mxu0 0.0
    %1806 = vmatpush1.msra.mxu0 0.0
    %1807 = vmatprep.subr.mxu0 0.0
    %1808 = vmatpush1.msra.mxu0 0.0
    %1809 = vmatprep.subr.mxu0 0.0
    %1810 = vmatpush1.msra.mxu0 0.0
    %1811 = vmatprep.subr.mxu0 0.0
    %1812 = vmatpush1.msra.mxu0 0.0
    %1813 = vmatprep.subr.mxu0 0.0
    %1814 = vmatpush1.msra.mxu0 0.0
    %1815 = vmatprep.subr.mxu0 0.0
    %1816 = vmatpush1.msra.mxu0 0.0
    %1817 = vmatprep.subr.mxu0 0.0
    %1818 = vmatpush1.msra.mxu0 0.0
    %1819 = vmatprep.subr.mxu0 0.0
    %1820 = vmatpush1.msra.mxu0 0.0
    %1821 = vmatprep.subr.mxu0 0.0
    %1822 = vmatpush1.msra.mxu0 0.0
    %1823 = vmatprep.subr.mxu0 0.0
    %1824 = vmatpush1.msra.mxu0 0.0
    %1825 = vmatprep.subr.mxu0 0.0
    %1826 = vmatpush1.msra.mxu0 0.0
    %1827 = vmatprep.subr.mxu0 0.0
    %1828 = vmatpush1.msra.mxu0 0.0
    %1829 = vmatprep.subr.mxu0 0.0
    %1830 = vmatpush1.msra.mxu0 0.0
    %1831 = vmatprep.subr.mxu0 0.0
    %1832 = vmatpush1.msra.mxu0 0.0
    %1833 = vmatprep.subr.mxu0 0.0
    %1834 = vmatpush1.msra.mxu0 0.0
    %1835 = vmatprep.subr.mxu0 0.0
    %1836 = vmatpush1.msra.mxu0 0.0
    %1837 = vmatprep.subr.mxu0 0.0
    %1838 = vmatpush1.msra.mxu0 0.0
    %1839 = vmatprep.mubr.f32.mxu0 0.0
    %1840 = vmatmul.mubr.f32.gmra.mrb[0].mxu0 %v1770
    %v1841 = vpop.f32.mrb[0].mxu0
    %v1842 = vadd.f32 %v1767, %v1841
    %v1843 = vpop.f32.mrb[0].mxu0
    %1844 = vmatprep.mubr.f32.mxu0 0.0
    %1845 = vmatmul.mubr.f32.gmra.mrb[0].mxu0 %v1773
    %v1846 = vpop.f32.mrb[0].mxu0
    %v1847 = vadd.f32 %v1767, %v1846
    %v1848 = vpop.f32.mrb[0].mxu0
    %1849 = vdwg.mxu0
    %v1850 = vmul.f32 %v1842, %v1842
    %v1851 = vmul.f32 %v1847, %v1847
    %v1852 = vmul.f32 %v1842, %v1850
    %v1853 = vmul.f32 %v1847, %v1851
    %v1854 = vmul.f32 %v1852, 0.044715
    %v1855 = vmul.f32 %v1853, 0.044715
    %v1856 = vadd.f32 %v1842, %v1854
    %v1857 = vadd.f32 %v1847, %v1855
    %v1858 = vmul.f32 %v1856, 0.7978846
    %v1859 = vmul.f32 %v1857, 0.7978846
    %v1860 = vtanh.pop %v1858
    %v1861 = vtanh.pop %v1859
    %v1862 = vadd.f32 %v1860, 1.0
    %v1863 = vadd.f32 %v1861, 1.0
    %v1864 = vmul.f32 %v1862, 0.5
    %v1865 = vmul.f32 %v1863, 0.5
    %v1866 = vmul.f32 %v1842, %v1864
    %v1867 = vmul.f32 %v1847, %v1865
    %v1868 = vld [vmem:[%s11] sm:$0xff]
    %v1869 = vld [vmem:[%s11 + $0x8] sm:$0xff]
    %v1870 = vld [vmem:[%s11 + $0x10] sm:$0xff]
    %v1871 = vld [vmem:[%s11 + $0x18] sm:$0xff]
    %v1872 = vld [vmem:[%s11 + $0x20] sm:$0xff]
    %v1873 = vld [vmem:[%s11 + $0x28] sm:$0xff]
    %v1874 = vld [vmem:[%s11 + $0x30] sm:$0xff]
    %v1875 = vld [vmem:[%s11 + $0x38] sm:$0xff]
    %v1876 = vld [vmem:[%s12] sm:$0x1]
    %v1878 = vlaneseq
    %v1879 = vshrl.u32 %v1878, 7
    %v1880 = vsub.s32 0, %v1879
    %v1881 = vrot.slane %v1876, %v1880
    %vm1883 = vcmask 523264
    %v1885 = vsel %vm1883, %v1866, 0
    %v1888 = vsel %vm1883, %v1867, 0
    %1890 = vmatprep.subr.mxu0 0.0
    %1891 = vmatpush1.msra.mxu0 %v1868
    %1892 = vmatprep.subr.mxu0 0.0
    %1893 = vmatpush1.msra.mxu0 %v1869
    %1894 = vmatprep.subr.mxu0 0.0
    %1895 = vmatpush1.msra.mxu0 %v1870
    %1896 = vmatprep.subr.mxu0 0.0
    %1897 = vmatpush1.msra.mxu0 %v1871
    %1898 = vmatprep.subr.mxu0 0.0
    %1899 = vmatpush1.msra.mxu0 %v1872
    %1900 = vmatprep.subr.mxu0 0.0
    %1901 = vmatpush1.msra.mxu0 %v1873
    %1902 = vmatprep.subr.mxu0 0.0
    %1903 = vmatpush1.msra.mxu0 %v1874
    %1904 = vmatprep.subr.mxu0 0.0
    %1905 = vmatpush1.msra.mxu0 %v1875
    %1906 = vmatprep.subr.mxu0 0.0
    %1907 = vmatpush1.msra.mxu0 0.0
    %1908 = vmatprep.subr.mxu0 0.0
    %1909 = vmatpush1.msra.mxu0 0.0
    %1910 = vmatprep.subr.mxu0 0.0
    %1911 = vmatpush1.msra.mxu0 0.0
    %1912 = vmatprep.subr.mxu0 0.0
    %1913 = vmatpush1.msra.mxu0 0.0
    %1914 = vmatprep.subr.mxu0 0.0
    %1915 = vmatpush1.msra.mxu0 0.0
    %1916 = vmatprep.subr.mxu0 0.0
    %1917 = vmatpush1.msra.mxu0 0.0
    %1918 = vmatprep.subr.mxu0 0.0
    %1919 = vmatpush1.msra.mxu0 0.0
    %1920 = vmatprep.subr.mxu0 0.0
    %1921 = vmatpush1.msra.mxu0 0.0
    %1922 = vmatprep.subr.mxu0 0.0
    %1923 = vmatpush1.msra.mxu0 0.0
    %1924 = vmatprep.subr.mxu0 0.0
    %1925 = vmatpush1.msra.mxu0 0.0
    %1926 = vmatprep.subr.mxu0 0.0
    %1927 = vmatpush1.msra.mxu0 0.0
    %1928 = vmatprep.subr.mxu0 0.0
    %1929 = vmatpush1.msra.mxu0 0.0
    %1930 = vmatprep.subr.mxu0 0.0
    %1931 = vmatpush1.msra.mxu0 0.0
    %1932 = vmatprep.subr.mxu0 0.0
    %1933 = vmatpush1.msra.mxu0 0.0
    %1934 = vmatprep.subr.mxu0 0.0
    %1935 = vmatpush1.msra.mxu0 0.0
    %1936 = vmatprep.subr.mxu0 0.0
    %1937 = vmatpush1.msra.mxu0 0.0
    %1938 = vmatprep.subr.mxu0 0.0
    %1939 = vmatpush1.msra.mxu0 0.0
    %1940 = vmatprep.subr.mxu0 0.0
    %1941 = vmatpush1.msra.mxu0 0.0
    %1942 = vmatprep.subr.mxu0 0.0
    %1943 = vmatpush1.msra.mxu0 0.0
    %1944 = vmatprep.subr.mxu0 0.0
    %1945 = vmatpush1.msra.mxu0 0.0
    %1946 = vmatprep.subr.mxu0 0.0
    %1947 = vmatpush1.msra.mxu0 0.0
    %1948 = vmatprep.subr.mxu0 0.0
    %1949 = vmatpush1.msra.mxu0 0.0
    %1950 = vmatprep.subr.mxu0 0.0
    %1951 = vmatpush1.msra.mxu0 0.0
    %1952 = vmatprep.subr.mxu0 0.0
    %1953 = vmatpush1.msra.mxu0 0.0
    %1954 = vmatprep.mubr.f32.mxu0 0.0
    %1955 = vmatmul.mubr.f32.gmra.mrb[0].mxu0 %v1885
    %v1956 = vpop.f32.mrb[0].mxu0
    %v1957 = vadd.f32 %v1881, %v1956
    %v1958 = vpop.f32.mrb[0].mxu0
    %1959 = vmatprep.mubr.f32.mxu0 0.0
    %1960 = vmatmul.mubr.f32.gmra.mrb[0].mxu0 %v1888
    %v1961 = vpop.f32.mrb[0].mxu0
    %v1962 = vadd.f32 %v1881, %v1961
    %v1963 = vpop.f32.mrb[0].mxu0
    %1964 = vdwg.mxu0
    %v1965 = vadd.f32 %v1756, %v1957
    %v1966 = vadd.f32 %v1757, %v1962
    %v1967 = vld [vmem:[%s13] sm:$0x1]
    %v1968 = vld [vmem:[%s14] sm:$0x1]
    %v1969 = vsel %vm125, %v1965, 0.0
    %1970 = vadd.xlane.f32.xlu0 %v1969
    %v1971 = vpop.xlane.xlu0 %1970
    %v1972 = vsel %vm125, %v1966, 0.0
    %1973 = vadd.xlane.f32.xlu0 %v1972
    %v1974 = vpop.xlane.xlu0 %1973
    %v1975 = vmul.f32 %v1971, %v132
    %v1976 = vmul.f32 %v1974, %v132
    %v1977 = vsub.f32 %v1965, %v1975
    %v1978 = vsub.f32 %v1966, %v1976
    %v1979 = vmul.f32 %v1977, %v1977
    %v1980 = vmul.f32 %v1978, %v1978
    %v1981 = vsel %vm125, %v1979, 0.0
    %1982 = vadd.xlane.f32.xlu0 %v1981
    %v1983 = vpop.xlane.xlu0 %1982
    %v1984 = vsel %vm125, %v1980, 0.0
    %1985 = vadd.xlane.f32.xlu0 %v1984
    %v1986 = vpop.xlane.xlu0 %1985
    %v1987 = vmul.f32 %v1983, %v132
    %v1988 = vmul.f32 %v1986, %v132
    %v1989 = vadd.f32 %v1987, 1e-12
    %v1990 = vadd.f32 %v1988, 1e-12
    %v1991 = vrsqrt.pop %v1989
    %v1992 = vrsqrt.pop %v1990
    %v1993 = vmul.f32 %v1977, %v1991
    %v1994 = vmul.f32 %v1978, %v1992
    %v1996 = vlaneseq
    %v1997 = vshrl.u32 %v1996, 7
    %v1998 = vsub.s32 0, %v1997
    %v1999 = vrot.slane %v1967, %v1998
    %v2001 = vmul.f32 %v1993, %v1999
    %v2002 = vmul.f32 %v1994, %v1999
    %v2004 = vlaneseq
    %v2005 = vshrl.u32 %v2004, 7
    %v2006 = vsub.s32 0, %v2005
    %v2007 = vrot.slane %v1968, %v2006
    %v2009 = vadd.f32 %v2001, %v2007
    %v2010 = vadd.f32 %v2002, %v2007
    %v2012 = vrot.slane %v2010, 7
    %vm2014 = vcmask 1040384
    %v2015 = vsel %vm2014, %v2009, %v2012
    %v2016 = vld [vmem:[%s15] sm:$0x3]
    %v2017 = vmul.f32 %v2015, %v2016
    %v2018 = vld [vmem:[#allocation8] sm:$0xff]
    %v2019 = vld [vmem:[#allocation8 + $0x8] sm:$0xff]
    %v2020 = vld [vmem:[#allocation8 + $0x10] sm:$0xff]
    %v2021 = vld [vmem:[#allocation8 + $0x18] sm:$0xff]
    %v2022 = vld [vmem:[%s17] sm:$0x1]
    %v2024 = vlaneseq
    %v2025 = vshrl.u32 %v2024, 7
    %v2026 = vsub.s32 0, %v2025
    %v2027 = vrot.slane %v2022, %v2026
    %v2030 = vsel %vm125, %v2017, 0
    %2032 = vmatprep.subr.mxu0 0.0
    %2033 = vmatpush1.msra.mxu0 %v2018
    %2034 = vmatprep.subr.mxu0 0.0
    %2035 = vmatpush1.msra.mxu0 %v2019
    %2036 = vmatprep.subr.mxu0 0.0
    %2037 = vmatpush1.msra.mxu0 %v2020
    %2038 = vmatprep.subr.mxu0 0.0
    %2039 = vmatpush1.msra.mxu0 %v2021
    %2040 = vmatprep.subr.mxu0 0.0
    %2041 = vmatpush1.msra.mxu0 0.0
    %2042 = vmatprep.subr.mxu0 0.0
    %2043 = vmatpush1.msra.mxu0 0.0
    %2044 = vmatprep.subr.mxu0 0.0
    %2045 = vmatpush1.msra.mxu0 0.0
    %2046 = vmatprep.subr.mxu0 0.0
    %2047 = vmatpush1.msra.mxu0 0.0
    %2048 = vmatprep.subr.mxu0 0.0
    %2049 = vmatpush1.msra.mxu0 0.0
    %2050 = vmatprep.subr.mxu0 0.0
    %2051 = vmatpush1.msra.mxu0 0.0
    %2052 = vmatprep.subr.mxu0 0.0
    %2053 = vmatpush1.msra.mxu0 0.0
    %2054 = vmatprep.subr.mxu0 0.0
    %2055 = vmatpush1.msra.mxu0 0.0
    %2056 = vmatprep.subr.mxu0 0.0
    %2057 = vmatpush1.msra.mxu0 0.0
    %2058 = vmatprep.subr.mxu0 0.0
    %2059 = vmatpush1.msra.mxu0 0.0
    %2060 = vmatprep.subr.mxu0 0.0
    %2061 = vmatpush1.msra.mxu0 0.0
    %2062 = vmatprep.subr.mxu0 0.0
    %2063 = vmatpush1.msra.mxu0 0.0
    %2064 = vmatprep.subr.mxu0 0.0
    %2065 = vmatpush1.msra.mxu0 0.0
    %2066 = vmatprep.subr.mxu0 0.0
    %2067 = vmatpush1.msra.mxu0 0.0
    %2068 = vmatprep.subr.mxu0 0.0
    %2069 = vmatpush1.msra.mxu0 0.0
    %2070 = vmatprep.subr.mxu0 0.0
    %2071 = vmatpush1.msra.mxu0 0.0
    %2072 = vmatprep.subr.mxu0 0.0
    %2073 = vmatpush1.msra.mxu0 0.0
    %2074 = vmatprep.subr.mxu0 0.0
    %2075 = vmatpush1.msra.mxu0 0.0
    %2076 = vmatprep.subr.mxu0 0.0
    %2077 = vmatpush1.msra.mxu0 0.0
    %2078 = vmatprep.subr.mxu0 0.0
    %2079 = vmatpush1.msra.mxu0 0.0
    %2080 = vmatprep.subr.mxu0 0.0
    %2081 = vmatpush1.msra.mxu0 0.0
    %2082 = vmatprep.subr.mxu0 0.0
    %2083 = vmatpush1.msra.mxu0 0.0
    %2084 = vmatprep.subr.mxu0 0.0
    %2085 = vmatpush1.msra.mxu0 0.0
    %2086 = vmatprep.subr.mxu0 0.0
    %2087 = vmatpush1.msra.mxu0 0.0
    %2088 = vmatprep.subr.mxu0 0.0
    %2089 = vmatpush1.msra.mxu0 0.0
    %2090 = vmatprep.subr.mxu0 0.0
    %2091 = vmatpush1.msra.mxu0 0.0
    %2092 = vmatprep.subr.mxu0 0.0
    %2093 = vmatpush1.msra.mxu0 0.0
    %2094 = vmatprep.subr.mxu0 0.0
    %2095 = vmatpush1.msra.mxu0 0.0
    %2096 = vmatprep.mubr.f32.mxu0 0.0
    %2097 = vmatmul.mubr.f32.gmra.mrb[0].mxu0 %v2030
    %v2098 = vpop.f32.mrb[0].mxu0
    %v2099 = vadd.f32 %v2027, %v2098
    %v2100 = vpop.f32.mrb[0].mxu0
    %2101 = vdwg.mxu0
    %v2102 = vmax.f32 %v2099, 0.0
    %v2103 = vld [vmem:[%s18] sm:$0xff]
    %v2104 = vld [vmem:[%s18 + $0x8] sm:$0xff]
    %v2105 = vld [vmem:[%s18 + $0x10] sm:$0xff]
    %v2106 = vld [vmem:[%s18 + $0x18] sm:$0xff]
    %v2107 = vld [vmem:[%s18 + $0x20] sm:$0xff]
    %v2108 = vld [vmem:[%s18 + $0x28] sm:$0xff]
    %v2109 = vld [vmem:[%s18 + $0x30] sm:$0xff]
    %v2110 = vld [vmem:[%s18 + $0x38] sm:$0xff]
    %v2111 = vld [vmem:[%s19] sm:$0x1]
    %v2113 = vlaneseq
    %v2114 = vshrl.u32 %v2113, 7
    %v2115 = vsub.s32 0, %v2114
    %v2116 = vrot.slane %v2111, %v2115
    %v2119 = vsel %vm1883, %v2102, 0
    %2121 = vmatprep.subr.mxu0 0.0
    %2122 = vmatpush1.msra.mxu0 %v2103
    %2123 = vmatprep.subr.mxu0 0.0
    %2124 = vmatpush1.msra.mxu0 %v2104
    %2125 = vmatprep.subr.mxu0 0.0
    %2126 = vmatpush1.msra.mxu0 %v2105
    %2127 = vmatprep.subr.mxu0 0.0
    %2128 = vmatpush1.msra.mxu0 %v2106
    %2129 = vmatprep.subr.mxu0 0.0
    %2130 = vmatpush1.msra.mxu0 %v2107
    %2131 = vmatprep.subr.mxu0 0.0
    %2132 = vmatpush1.msra.mxu0 %v2108
    %2133 = vmatprep.subr.mxu0 0.0
    %2134 = vmatpush1.msra.mxu0 %v2109
    %2135 = vmatprep.subr.mxu0 0.0
    %2136 = vmatpush1.msra.mxu0 %v2110
    %2137 = vmatprep.subr.mxu0 0.0
    %2138 = vmatpush1.msra.mxu0 0.0
    %2139 = vmatprep.subr.mxu0 0.0
    %2140 = vmatpush1.msra.mxu0 0.0
    %2141 = vmatprep.subr.mxu0 0.0
    %2142 = vmatpush1.msra.mxu0 0.0
    %2143 = vmatprep.subr.mxu0 0.0
    %2144 = vmatpush1.msra.mxu0 0.0
    %2145 = vmatprep.subr.mxu0 0.0
    %2146 = vmatpush1.msra.mxu0 0.0
    %2147 = vmatprep.subr.mxu0 0.0
    %2148 = vmatpush1.msra.mxu0 0.0
    %2149 = vmatprep.subr.mxu0 0.0
    %2150 = vmatpush1.msra.mxu0 0.0
    %2151 = vmatprep.subr.mxu0 0.0
    %2152 = vmatpush1.msra.mxu0 0.0
    %2153 = vmatprep.subr.mxu0 0.0
    %2154 = vmatpush1.msra.mxu0 0.0
    %2155 = vmatprep.subr.mxu0 0.0
    %2156 = vmatpush1.msra.mxu0 0.0
    %2157 = vmatprep.subr.mxu0 0.0
    %2158 = vmatpush1.msra.mxu0 0.0
    %2159 = vmatprep.subr.mxu0 0.0
    %2160 = vmatpush1.msra.mxu0 0.0
    %2161 = vmatprep.subr.mxu0 0.0
    %2162 = vmatpush1.msra.mxu0 0.0
    %2163 = vmatprep.subr.mxu0 0.0
    %2164 = vmatpush1.msra.mxu0 0.0
    %2165 = vmatprep.subr.mxu0 0.0
    %2166 = vmatpush1.msra.mxu0 0.0
    %2167 = vmatprep.subr.mxu0 0.0
    %2168 = vmatpush1.msra.mxu0 0.0
    %2169 = vmatprep.subr.mxu0 0.0
    %2170 = vmatpush1.msra.mxu0 0.0
    %2171 = vmatprep.subr.mxu0 0.0
    %2172 = vmatpush1.msra.mxu0 0.0
    %2173 = vmatprep.subr.mxu0 0.0
    %2174 = vmatpush1.msra.mxu0 0.0
    %2175 = vmatprep.subr.mxu0 0.0
    %2176 = vmatpush1.msra.mxu0 0.0
    %2177 = vmatprep.subr.mxu0 0.0
    %2178 = vmatpush1.msra.mxu0 0.0
    %2179 = vmatprep.subr.mxu0 0.0
    %2180 = vmatpush1.msra.mxu0 0.0
    %2181 = vmatprep.subr.mxu0 0.0
    %2182 = vmatpush1.msra.mxu0 0.0
    %2183 = vmatprep.subr.mxu0 0.0
    %2184 = vmatpush1.msra.mxu0 0.0
    %2185 = vmatprep.mubr.f32.mxu0 0.0
    %2186 = vmatmul.mubr.f32.gmra.mrb[0].mxu0 %v2119
    %v2187 = vpop.f32.mrb[0].mxu0
    %v2188 = vadd.f32 %v2116, %v2187
    %v2189 = vpop.f32.mrb[0].mxu0
    %2190 = vdwg.mxu0
    %2191 = vst [vmem:[#allocation10] sm:$0x3] %v2188
    // Predicated region
    $region98: #{tpu_custom_call.1} parent=1 // pred_check
      _
    $region99: #{tpu_custom_call.1} parent=1 // pred_check_branch
      %2193 = sbr.rel (0) target = $region101
    $region100: #{tpu_custom_call.1} parent=1 // pred_region
      %s2195 = ssub.s32 32, 32
      %2196 = vsyncadd [#allocation4], %s2195
      %s2198 = sshll.u32 [#allocation10], 4
      %s2199 = int_to_ptr.vmem [resolvable:$true] %s2198
      %2201 = dma.vmem_to_hbm [thread:$0]  %s2199, 32, %s20, [#allocation4]
    $region101: #{tpu_custom_call.1} parent=1 // pred_fallthru
      _
    // Predicated region
    $region102: #{tpu_custom_call.1} parent=1 // pred_check
      _
    $region103: #{tpu_custom_call.1} parent=1 // pred_check_branch
      %2203 = sbr.rel (0) target = $region105
    $region104: #{tpu_custom_call.1} parent=1 // pred_region
      %2204 = dma.done [#allocation4], 32
    $region105: #{tpu_custom_call.1} parent=1 // pred_fallthru
      _
    %2205 = vsyncpa [#allocation3], 1
    %2206 = vsyncpa [#allocation6], 1
    %2207 = vsyncpa [#allocation9], 1
    %2208 = vsyncpa [#allocation4], 1

</llo_original>
